<compile_context>
chip_gen: v6e
topology: v6e:2x2x1
jax: 0.10.0
libtpu: 0.0.40
codegen_flags: <defaults>
</compile_context>

<pallas_src>
import functools

import numpy as np
import jax
import jax.numpy as jnp
from jax import lax
from jax.experimental import pallas as pl
from jax.experimental.pallas import tpu as pltpu

HIDDEN = 32  # hidden width of common.MLP
# TODO(synk): `common.MLP(2, nmax+1)` architecture is not given in the source;
# assumed here: Linear(2,H) -> tanh -> Linear(H,H) -> tanh -> Linear(H, nmax+1).

_VMEM_SPEC = pl.BlockSpec(memory_space=pltpu.MemorySpace.VMEM)


# ----------------------------------------------------------------------------
# Pallas kernels
# ----------------------------------------------------------------------------
def _mlp_forward_kernel(x_ref, w1_ref, b1_ref, w2_ref, b2_ref, w3_ref, b3_ref,
                        out_ref):
    """Plain MLP forward:  out = W3(tanh(W2(tanh(W1 x + b1)) + b2)) + b3.

    Layer 1 is done on the VPU (two broadcast FMAs) — K=2 is too small for
    the MXU.
    """
    x = x_ref[...]                                   # (B, 2)
    w1 = w1_ref[...]                                 # (2, H)
    s_col = x[:, 0:1]
    t_col = x[:, 1:2]
    z1 = s_col * w1[0:1, :] + t_col * w1[1:2, :] + b1_ref[...]    # (B, H)
    h1 = jnp.tanh(z1)
    z2 = jnp.dot(h1, w2_ref[...], preferred_element_type=jnp.float32) + b2_ref[...]
    h2 = jnp.tanh(z2)
    out_ref[...] = (jnp.dot(h2, w3_ref[...], preferred_element_type=jnp.float32)
                    + b3_ref[...])


def _bsde_fused_kernel(x_ref, n_ref, db_ref,
                       w1_ref, b1_ref, w2_ref, b2_ref, w3t_ref, b3_ref,
                       u_out_ref, ps_acc, pss_acc, *, delta_t):
    """One grid step of the fused BSDE time recursion.

    Grid step s corresponds to time-column N-s of the sample paths:
      s == 0 : u <- value at column N (t_k = t); store ps/pss.
      s >= 1 : u <- u - ps_prev * dB[:, N-s] - pss_prev * dt/2, then
               recompute (ps, pss) at column N-s with t_k = t - (s-1)*dt.
    (value, d/ds, d2/ds2) of the n-selected MLP output are propagated
    analytically in forward mode (replaces the two torch.autograd.grad calls).
    """
    step = pl.program_id(0)

    # -- apply previous step's (ps, pss) to the resident accumulator u -------
    @pl.when(step > 0)
    def _():
        u_out_ref[...] = (u_out_ref[...]
                          - ps_acc[...] * db_ref[0]
                          - pss_acc[...] * (0.5 * delta_t))

    # -- forward-mode (value, d/ds, d2/ds2) through the MLP ------------------
    x = x_ref[0]                                     # (B, 2) = [s, t_k]
    w1 = w1_ref[...]                                 # (2, H)
    b1 = b1_ref[...]                                 # (1, H)
    s_col = x[:, 0:1]                                # (B, 1)
    t_col = x[:, 1:2]                                # (B, 1)

    # layer 1 on the VPU: z1 = s*w1[0,:] + t*w1[1,:] + b1 ;  dz1 = w1[0,:]
    w1_s = w1[0:1, :]                                # (1, H)
    w1_t = w1[1:2, :]
    z1 = s_col * w1_s + t_col * w1_t + b1            # (B, H)
    dz1 = jnp.broadcast_to(w1_s, z1.shape)           # d z1 / d s (ddz1 == 0)
    h1 = jnp.tanh(z1)
    g1 = 1.0 - h1 * h1                               # tanh'
    dh1 = g1 * dz1
    ddh1 = -2.0 * h1 * g1 * dz1 * dz1                # tanh'' * dz1^2

    # layer 2 (MXU)
    w2 = w2_ref[...]
    z2 = jnp.dot(h1, w2, preferred_element_type=jnp.float32) + b2_ref[...]
    dz2 = jnp.dot(dh1, w2, preferred_element_type=jnp.float32)
    ddz2 = jnp.dot(ddh1, w2, preferred_element_type=jnp.float32)
    h2 = jnp.tanh(z2)
    g2 = 1.0 - h2 * h2
    dh2 = g2 * dz2
    ddh2 = -2.0 * h2 * g2 * dz2 * dz2 + g2 * ddz2

    # output-column selection: gather w3[:, n] via an iota==n mask @ w3^T
    B = x_ref.shape[1]
    O = w3t_ref.shape[0]
    n = n_ref[0]                                     # (B, 1) int32
    mask = (lax.broadcasted_iota(jnp.int32, (B, O), 1) == n).astype(jnp.float32)
    w3_sel = jnp.dot(mask, w3t_ref[...], preferred_element_type=jnp.float32)  # (B, H)
    b3_sel = jnp.sum(mask * b3_ref[...], axis=-1, keepdims=True)              # (B, 1)

    u_val = jnp.sum(h2 * w3_sel, axis=-1, keepdims=True) + b3_sel
    ps = jnp.sum(dh2 * w3_sel, axis=-1, keepdims=True)
    pss = jnp.sum(ddh2 * w3_sel, axis=-1, keepdims=True)

    @pl.when(step == 0)
    def _():
        u_out_ref[...] = u_val

    ps_acc[...] = ps
    pss_acc[...] = pss


# ----------------------------------------------------------------------------
# Pallas-call wrappers
# ----------------------------------------------------------------------------
def _mlp_forward_call(x, params):
    w1, b1, w2, b2, w3, b3 = params
    B = x.shape[0]
    O = w3.shape[1]
    return pl.pallas_call(
        _mlp_forward_kernel,
        out_shape=jax.ShapeDtypeStruct((B, O), jnp.float32),
        in_specs=[_VMEM_SPEC] * 7,
        out_specs=_VMEM_SPEC,
    )(x, w1, b1, w2, b2, w3, b3)


def _fused_bsde_call(x_slab, n_slab, db_slab, params, delta_t):
    """One pallas_call for the whole time recursion.  Returns u of shape (B,1)."""
    w1, b1, w2, b2, w3, b3 = params
    w3t = w3.T                                       # (O, H), transposed once
    Np1, B, _ = x_slab.shape
    H = w1.shape[1]
    O = w3.shape[1]

    kernel = functools.partial(_bsde_fused_kernel, delta_t=float(delta_t))

    # TODO(synk): for realistic batch sizes add a leading "parallel" batch-tile
    # grid axis (TB rows per tile) and re-derive TB for v7x's 64 MiB VMEM.
    grid_spec = pltpu.PrefetchScalarGridSpec(
        num_scalar_prefetch=0,
        grid=(Np1,),
        in_specs=[
            # per-step streams
            pl.BlockSpec((1, B, 2), lambda s: (s, 0, 0)),   # x = [s, t_k]
            pl.BlockSpec((1, B, 1), lambda s: (s, 0, 0)),   # n (int32)
            pl.BlockSpec((1, B, 1), lambda s: (s, 0, 0)),   # dB
            # VMEM-resident weights (constant index maps -> fetched once)
            pl.BlockSpec((2, H), lambda s: (0, 0)),         # w1
            pl.BlockSpec((1, H), lambda s: (0, 0)),         # b1
            pl.BlockSpec((H, H), lambda s: (0, 0)),         # w2
            pl.BlockSpec((1, H), lambda s: (0, 0)),         # b2
            pl.BlockSpec((O, H), lambda s: (0, 0)),         # w3^T
            pl.BlockSpec((1, O), lambda s: (0, 0)),         # b3
        ],
        out_specs=pl.BlockSpec((B, 1), lambda s: (0, 0)),   # resident accumulator
        scratch_shapes=[pltpu.VMEM((B, 1), jnp.float32),    # ps carry
                        pltpu.VMEM((B, 1), jnp.float32)],   # pss carry
    )

    return pl.pallas_call(
        kernel,
        out_shape=jax.ShapeDtypeStruct((B, 1), jnp.float32),
        grid_spec=grid_spec,
        compiler_params=pltpu.CompilerParams(
            dimension_semantics=("arbitrary",)),
    )(x_slab, n_slab, db_slab, w1, b1, w2, b2, w3t, b3)


# ----------------------------------------------------------------------------
# Device-side core (jitted): slab construction + fused kernel + tail MLP
# ----------------------------------------------------------------------------
@functools.partial(
    jax.jit,
    static_argnames=("t", "N", "delta_t", "nmax", "kmin", "kmax"))
def _bsde_device_core(params, samples_n, samples_s, samples_dB, ss_bound,
                      *, t, N, delta_t, nmax, kmin, kmax):
    B = samples_s.shape[0]

    # ---- per-step input slabs (built once, on device) ----------------------
    # slab index s <-> time column N-s ;  t_k(0) = t, t_k(s>=1) = t - (s-1)*dt
    tk_np = (t - np.maximum(np.arange(N + 1) - 1, 0) * delta_t).astype(np.float32)
    tk_vals = jnp.asarray(tk_np)                                    # (N+1,)
    s_rev = samples_s[:, ::-1].T                                    # (N+1, B)
    tk_mat = jnp.broadcast_to(tk_vals[:, None], (N + 1, B))
    x_slab = jnp.stack([s_rev, tk_mat], axis=-1).astype(jnp.float32)   # (N+1,B,2)
    n_slab = samples_n[:, ::-1].T[:, :, None].astype(jnp.int32)        # (N+1,B,1)
    db_rev = samples_dB[:, ::-1].T.astype(jnp.float32)                 # (N, B)
    db_slab = jnp.concatenate(
        [jnp.zeros((1, B), jnp.float32), db_rev], axis=0)[:, :, None]  # (N+1,B,1)

    # ---- fused time recursion ----------------------------------------------
    u = _fused_bsde_call(x_slab, n_slab, db_slab, params, delta_t)

    # ---- boundary batch + integral grid in ONE plain MLP call --------------
    delta_s = (kmax - kmin) * t / N
    ss_lin = np.linspace(kmin * t, kmax * t - delta_s, N,
                         dtype=np.float32).reshape(N, 1)
    ss_all = jnp.concatenate(
        [ss_bound.astype(jnp.float32), jnp.asarray(ss_lin)], axis=0)
    x_tail = jnp.concatenate([ss_all, jnp.full_like(ss_all, t)], axis=1)
    out_tail = _mlp_forward_call(x_tail, params)
    nb = ss_bound.shape[0]
    us = out_tail[:nb]                  # boundary-sample MLP values
    result = out_tail[nb:]              # integral-grid MLP values
    uint = jnp.sum(result) * delta_s - 1.0
    up = jnp.maximum(-result, 0.0)      # relu(-result)

    # ---- terminal condition u0(n, s) (n ignored by the formula) ------------
    beta = 1.0e7
    s0 = samples_s[:, 0:1].astype(jnp.float32)
    u0 = (jnp.sqrt(beta / 2.0 / np.pi) * jnp.exp(-beta * s0 ** 2 / 2.0)
          / (nmax + 1))

    return u, u0, us, uint, up


# ----------------------------------------------------------------------------
# Host-side stochastic sample generation (PolymerDiffusion.get_samples / delta_N)
# ----------------------------------------------------------------------------
def _U(x, D0, nmin, alpha):
    return D0 / (x + nmin) ** alpha


def _delta_N(key, pre_n, delta_t, lam, mu, nmax, forward=True, k=20):
    k_un, k_eta = jax.random.split(key)
    Un = np.asarray(jax.random.uniform(k_un, (k,)), dtype=np.float64)
    log_res = -np.log(np.maximum(Un, 1e-30))
    lambda_k = log_res / lam / 2.0
    mu_k = log_res / mu / 2.0
    lambda_sk = np.zeros(k + 1)
    mu_sk = np.zeros(k + 1)
    for i in range(k):
        lambda_sk[i + 1] = lambda_sk[i] + lambda_k[i]
        mu_sk[i + 1] = mu_sk[i] + mu_k[i]
    delta_n = np.zeros_like(pre_n, dtype=np.float32)
    rand_eta = np.asarray(jax.random.uniform(k_eta, (pre_n.shape[0],)))
    for i in range(pre_n.shape[0]):
        if rand_eta[i] < 0.5:
            for j in range(k):
                if delta_t < lambda_sk[j + 1]:
                    if forward and pre_n[i, 0] <= nmax - j:
                        delta_n[i, 0] = j
                    elif (not forward) and pre_n[i, 0] >= j:
                        delta_n[i, 0] = j
                    break
        else:
            for j in range(k):
                if delta_t < mu_sk[j + 1]:
                    if forward and pre_n[i, 0] >= j:
                        delta_n[i, 0] = -j
                    elif (not forward) and pre_n[i, 0] <= nmax - j:
                        delta_n[i, 0] = -j
                    break
    return delta_n


def get_samples(key, delta_t, N, lam, mu, D0, nmin, nmax, alpha, batch_size):
    keys = jax.random.split(key, 2 * N + 4)
    X1 = np.asarray(jax.random.randint(keys[0], (batch_size, N + 1), 0, nmax + 1),
                    dtype=np.float32)
    X2 = np.zeros_like(X1)
    dB = np.asarray(jax.random.normal(keys[1], (batch_size, N)),
                    dtype=np.float32) * np.sqrt(delta_t)
    for i in range(N):
        dn = _delta_N(keys[4 + i], X1[:, i:i + 1], delta_t, lam, mu, nmax,
                      forward=True, k=5)
        X1[:, i + 1:i + 2] = X1[:, i:i + 1] + dn
        X2[:, i + 1:i + 2] = (X2[:, i:i + 1]
                              + _U(X1[:, i:i + 1], D0, nmin, alpha) * delta_t
                              + dB[:, i:i + 1])
    X1b = np.asarray(jax.random.randint(keys[2], (batch_size, N + 1), 0, nmax + 1),
                     dtype=np.float32)
    X2b = np.zeros_like(X2)
    dBb = np.asarray(jax.random.normal(keys[3], (batch_size, N)),
                     dtype=np.float32) * np.sqrt(delta_t)
    X1b[:, N] = X1[:, N]
    X2b[:, N] = X2[:, N]
    for i in range(N):
        dn = _delta_N(keys[4 + N + i], X1b[:, N - i:N - i + 1], delta_t, lam, mu,
                      nmax, forward=False, k=5)
        X1b[:, N - i - 1:N - i] = X1b[:, N - i:N - i + 1] - dn
        X2b[:, N - i - 1:N - i] = (X2b[:, N - i:N - i + 1]
                                   - _U(X1b[:, N - i:N - i + 1], D0, nmin, alpha) * delta_t
                                   - dBb[:, N - i - 1:N - i])
    return (np.concatenate([X1, X1b], axis=0),
            np.concatenate([X2, X2b], axis=0),
            np.concatenate([dB, dBb], axis=0))


# ----------------------------------------------------------------------------
# deepBSDEplus.forward
# ----------------------------------------------------------------------------
def init_mlp_params(key, in_dim, hidden, out_dim):
    k1, k2, k3 = jax.random.split(key, 3)
    w1 = jax.random.normal(k1, (in_dim, hidden), jnp.float32) / np.sqrt(in_dim)
    b1 = jnp.zeros((1, hidden), jnp.float32)
    w2 = jax.random.normal(k2, (hidden, hidden), jnp.float32) / np.sqrt(hidden)
    b2 = jnp.zeros((1, hidden), jnp.float32)
    w3 = jax.random.normal(k3, (hidden, out_dim), jnp.float32) / np.sqrt(hidden)
    b3 = jnp.zeros((1, out_dim), jnp.float32)
    return (w1, b1, w2, b2, w3, b3)


def deep_bsde_plus_forward(t, N, params, cfg, key):
    lam, mu, D0, nmin, nmax, alpha, batch_size = cfg
    delta_t = t / N

    # host-side stochastic jump-process paths (data-dependent control flow)
    key, k_samp = jax.random.split(key)
    samples_n, samples_s, samples_dB = get_samples(
        k_samp, delta_t, N, lam, mu, D0, nmin, nmax, alpha, batch_size)

    kmin = _U(float(nmax), D0, nmin, alpha)   # U(nmax)
    kmax = _U(0.0, D0, nmin, alpha)           # U(0)

    # boundary samples in s (on device)
    key, k1, k2 = jax.random.split(key, 3)
    half = int(batch_size / 2)
    ss1 = jax.random.uniform(k1, (half, 1), jnp.float32) * 2.0 + kmax * t
    ss2 = (jax.random.uniform(k2, (half, 1), jnp.float32) - 1.0) * 2.0 + kmin * t
    ss_bound = jnp.concatenate([ss1, ss2], axis=0)

    return _bsde_device_core(
        params,
        jnp.asarray(samples_n, jnp.float32),
        jnp.asarray(samples_s, jnp.float32),
        jnp.asarray(samples_dB, jnp.float32),
        ss_bound,
        t=float(t), N=int(N), delta_t=float(delta_t), nmax=int(nmax),
        kmin=float(kmin), kmax=float(kmax))


# ----------------------------------------------------------------------------
if __name__ == "__main__":
    # module hyper-parameters (small, consistent with the reference module)
    lam, mu, D0, nmin, nmax, alpha = 1.0, 1.0, 1.0, 1.0, 9, 1.0
    batch_size = 8
    t, N = 1.0, 8

    key = jax.random.PRNGKey(0)
    key_params, key_fwd = jax.random.split(key)
    params = init_mlp_params(key_params, 2, HIDDEN, nmax + 1)

    cfg = (lam, mu, D0, nmin, nmax, alpha, batch_size)
    u, u0, us, uint, up = deep_bsde_plus_forward(t, N, params, cfg, key_fwd)
    jax.block_until_ready((u, u0, us, uint, up))

    assert u.shape == (2 * batch_size, 1)
    assert u0.shape == (2 * batch_size, 1)
    assert us.shape == (batch_size, nmax + 1)
    assert uint.shape == ()
    assert up.shape == (N, nmax + 1)
    assert np.all(np.isfinite(np.asarray(u)))
    print("KERNEL_OK")
</pallas_src>

<mosaic_0001>
module attributes {stable_mosaic.version = 11 : i64} {
  func.func @_mlp_forward_kernel(%arg0: memref<16x2xf32, #tpu.memory_space<vmem>>, %arg1: memref<2x32xf32, #tpu.memory_space<vmem>>, %arg2: memref<1x32xf32, #tpu.memory_space<vmem>>, %arg3: memref<32x32xf32, #tpu.memory_space<vmem>>, %arg4: memref<1x32xf32, #tpu.memory_space<vmem>>, %arg5: memref<32x10xf32, #tpu.memory_space<vmem>>, %arg6: memref<1x10xf32, #tpu.memory_space<vmem>>, %arg7: memref<16x10xf32, #tpu.memory_space<vmem>>) attributes {dimension_semantics = [], scalar_prefetch = 0 : i64, scratch_operands = 0 : i64, tpu.core_type = #tpu.core_type<tc>} {
    %c0 = arith.constant 0 : index
    %c0_0 = arith.constant 0 : index
    %0 = vector.load %arg0[%c0, %c0_0] : memref<16x2xf32, #tpu.memory_space<vmem>>, vector<16x2xf32>
    %c0_1 = arith.constant 0 : index
    %c0_2 = arith.constant 0 : index
    %1 = vector.load %arg1[%c0_1, %c0_2] : memref<2x32xf32, #tpu.memory_space<vmem>>, vector<2x32xf32>
    %2 = vector.extract_strided_slice %0 {offsets = [0, 0], sizes = [16, 1], strides = [1, 1]} : vector<16x2xf32> to vector<16x1xf32>
    %3 = vector.extract_strided_slice %0 {offsets = [0, 1], sizes = [16, 1], strides = [1, 1]} : vector<16x2xf32> to vector<16x1xf32>
    %4 = vector.extract_strided_slice %1 {offsets = [0, 0], sizes = [1, 32], strides = [1, 1]} : vector<2x32xf32> to vector<1x32xf32>
    %5 = vector.broadcast %2 : vector<16x1xf32> to vector<16x32xf32>
    %6 = vector.broadcast %4 : vector<1x32xf32> to vector<16x32xf32>
    %7 = arith.mulf %5, %6 : vector<16x32xf32>
    %8 = vector.extract_strided_slice %1 {offsets = [1, 0], sizes = [1, 32], strides = [1, 1]} : vector<2x32xf32> to vector<1x32xf32>
    %9 = vector.broadcast %3 : vector<16x1xf32> to vector<16x32xf32>
    %10 = vector.broadcast %8 : vector<1x32xf32> to vector<16x32xf32>
    %11 = arith.mulf %9, %10 : vector<16x32xf32>
    %12 = arith.addf %7, %11 : vector<16x32xf32>
    %c0_3 = arith.constant 0 : index
    %c0_4 = arith.constant 0 : index
    %13 = vector.load %arg2[%c0_3, %c0_4] : memref<1x32xf32, #tpu.memory_space<vmem>>, vector<1x32xf32>
    %14 = vector.broadcast %13 : vector<1x32xf32> to vector<16x32xf32>
    %15 = arith.addf %12, %14 : vector<16x32xf32>
    %16 = math.tanh %15 : vector<16x32xf32>
    %c0_5 = arith.constant 0 : index
    %c0_6 = arith.constant 0 : index
    %17 = vector.load %arg3[%c0_5, %c0_6] : memref<32x32xf32, #tpu.memory_space<vmem>>, vector<32x32xf32>
    %cst = arith.constant dense<0.000000e+00> : vector<16x32xf32>
    %18 = tpu.matmul %16, %17, %cst {dimension_numbers = #tpu.dot_dimension_numbers<[1], [0], [0], [1], [0, 0, 1, 1], [], []>} : vector<16x32xf32>, vector<32x32xf32>, vector<16x32xf32> -> vector<16x32xf32>
    %c0_7 = arith.constant 0 : index
    %c0_8 = arith.constant 0 : index
    %19 = vector.load %arg4[%c0_7, %c0_8] : memref<1x32xf32, #tpu.memory_space<vmem>>, vector<1x32xf32>
    %20 = vector.broadcast %19 : vector<1x32xf32> to vector<16x32xf32>
    %21 = arith.addf %18, %20 : vector<16x32xf32>
    %22 = math.tanh %21 : vector<16x32xf32>
    %c0_9 = arith.constant 0 : index
    %c0_10 = arith.constant 0 : index
    %23 = vector.load %arg5[%c0_9, %c0_10] : memref<32x10xf32, #tpu.memory_space<vmem>>, vector<32x10xf32>
    %cst_11 = arith.constant dense<0.000000e+00> : vector<16x10xf32>
    %24 = tpu.matmul %22, %23, %cst_11 {dimension_numbers = #tpu.dot_dimension_numbers<[1], [0], [0], [1], [0, 0, 1, 1], [], []>} : vector<16x32xf32>, vector<32x10xf32>, vector<16x10xf32> -> vector<16x10xf32>
    %c0_12 = arith.constant 0 : index
    %c0_13 = arith.constant 0 : index
    %25 = vector.load %arg6[%c0_12, %c0_13] : memref<1x10xf32, #tpu.memory_space<vmem>>, vector<1x10xf32>
    %26 = vector.broadcast %25 : vector<1x10xf32> to vector<16x10xf32>
    %27 = arith.addf %24, %26 : vector<16x10xf32>
    %c0_14 = arith.constant 0 : index
    %c0_15 = arith.constant 0 : index
    %28 = vector.load %arg7[%c0_14, %c0_15] : memref<16x10xf32, #tpu.memory_space<vmem>>, vector<16x10xf32>
    tpu.vector_store %arg7[%c0_14, %c0_15], %27 {strides = array<i32>} : memref<16x10xf32, #tpu.memory_space<vmem>>, vector<16x10xf32>,
    return
  }
}

module attributes {stable_mosaic.version = 11 : i64} {
  func.func @_bsde_fused_kernel(%arg0: i32, %arg1: memref<1x16x2xf32, #tpu.memory_space<vmem>>, %arg2: memref<1x16x1xi32, #tpu.memory_space<vmem>>, %arg3: memref<1x16x1xf32, #tpu.memory_space<vmem>>, %arg4: memref<2x32xf32, #tpu.memory_space<vmem>>, %arg5: memref<1x32xf32, #tpu.memory_space<vmem>>, %arg6: memref<32x32xf32, #tpu.memory_space<vmem>>, %arg7: memref<1x32xf32, #tpu.memory_space<vmem>>, %arg8: memref<10x32xf32, #tpu.memory_space<vmem>>, %arg9: memref<1x10xf32, #tpu.memory_space<vmem>>, %arg10: memref<16x1xf32, #tpu.memory_space<vmem>>, %arg11: memref<16x1xf32, #tpu.memory_space<vmem>>, %arg12: memref<16x1xf32, #tpu.memory_space<vmem>>) attributes {dimension_semantics = [#tpu.dimension_semantics<arbitrary>], iteration_bounds = array<i64: 9>, scalar_prefetch = 0 : i64, scratch_operands = 2 : i64, tpu.core_type = #tpu.core_type<tc>, window_params = [{transform_indices = @transform_0, window_bounds = array<i64: 1, 16, 2>}, {transform_indices = @transform_1, window_bounds = array<i64: 1, 16, 1>}, {transform_indices = @transform_2, window_bounds = array<i64: 1, 16, 1>}, {pipeline_mode = #tpu.pipeline_mode<synchronous>, transform_indices = @transform_3, window_bounds = array<i64: 2, 32>}, {pipeline_mode = #tpu.pipeline_mode<synchronous>, transform_indices = @transform_4, window_bounds = array<i64: 1, 32>}, {pipeline_mode = #tpu.pipeline_mode<synchronous>, transform_indices = @transform_5, window_bounds = array<i64: 32, 32>}, {pipeline_mode = #tpu.pipeline_mode<synchronous>, transform_indices = @transform_6, window_bounds = array<i64: 1, 32>}, {pipeline_mode = #tpu.pipeline_mode<synchronous>, transform_indices = @transform_7, window_bounds = array<i64: 10, 32>}, {pipeline_mode = #tpu.pipeline_mode<synchronous>, transform_indices = @transform_8, window_bounds = array<i64: 1, 10>}, {pipeline_mode = #tpu.pipeline_mode<synchronous>, transform_indices = @transform_9, window_bounds = array<i64: 16, 1>}]} {
    %c0_i32 = arith.constant 0 : i32
    %0 = arith.cmpi sgt, %arg0, %c0_i32 : i32
    %1 = arith.extui %0 : i1 to i32
    %c0_i32_0 = arith.constant 0 : i32
    %2 = arith.cmpi ne, %1, %c0_i32_0 : i32
    scf.if %2 {
      %c0_35 = arith.constant 0 : index
      %c0_36 = arith.constant 0 : index
      %80 = vector.load %arg10[%c0_35, %c0_36] : memref<16x1xf32, #tpu.memory_space<vmem>>, vector<16x1xf32>
      %c0_37 = arith.constant 0 : index
      %c0_38 = arith.constant 0 : index
      %81 = vector.load %arg11[%c0_37, %c0_38] : memref<16x1xf32, #tpu.memory_space<vmem>>, vector<16x1xf32>
      %c0_39 = arith.constant 0 : index
      %c0_40 = arith.constant 0 : index
      %c0_41 = arith.constant 0 : index
      %82 = vector.load %arg3[%c0_39, %c0_40, %c0_41] : memref<1x16x1xf32, #tpu.memory_space<vmem>>, vector<1x16x1xf32>
      %83 = vector.shape_cast %82 : vector<1x16x1xf32> to vector<16x1xf32>
      %84 = arith.mulf %81, %83 : vector<16x1xf32>
      %85 = arith.subf %80, %84 : vector<16x1xf32>
      %c0_42 = arith.constant 0 : index
      %c0_43 = arith.constant 0 : index
      %86 = vector.load %arg12[%c0_42, %c0_43] : memref<16x1xf32, #tpu.memory_space<vmem>>, vector<16x1xf32>
      %cst_44 = arith.constant 6.250000e-02 : f32
      %87 = vector.broadcast %cst_44 : f32 to vector<16x1xf32>
      %88 = arith.mulf %86, %87 : vector<16x1xf32>
      %89 = arith.subf %85, %88 : vector<16x1xf32>
      %c0_45 = arith.constant 0 : index
      %c0_46 = arith.constant 0 : index
      %90 = vector.load %arg10[%c0_45, %c0_46] : memref<16x1xf32, #tpu.memory_space<vmem>>, vector<16x1xf32>
      tpu.vector_store %arg10[%c0_45, %c0_46], %89 {strides = array<i32>} : memref<16x1xf32, #tpu.memory_space<vmem>>, vector<16x1xf32>,
    } else {
    }
    %c0 = arith.constant 0 : index
    %c0_1 = arith.constant 0 : index
    %c0_2 = arith.constant 0 : index
    %3 = vector.load %arg1[%c0, %c0_1, %c0_2] : memref<1x16x2xf32, #tpu.memory_space<vmem>>, vector<1x16x2xf32>
    %4 = vector.shape_cast %3 : vector<1x16x2xf32> to vector<16x2xf32>
    %c0_3 = arith.constant 0 : index
    %c0_4 = arith.constant 0 : index
    %5 = vector.load %arg4[%c0_3, %c0_4] : memref<2x32xf32, #tpu.memory_space<vmem>>, vector<2x32xf32>
    %c0_5 = arith.constant 0 : index
    %c0_6 = arith.constant 0 : index
    %6 = vector.load %arg5[%c0_5, %c0_6] : memref<1x32xf32, #tpu.memory_space<vmem>>, vector<1x32xf32>
    %7 = vector.extract_strided_slice %4 {offsets = [0, 0], sizes = [16, 1], strides = [1, 1]} : vector<16x2xf32> to vector<16x1xf32>
    %8 = vector.extract_strided_slice %4 {offsets = [0, 1], sizes = [16, 1], strides = [1, 1]} : vector<16x2xf32> to vector<16x1xf32>
    %9 = vector.extract_strided_slice %5 {offsets = [0, 0], sizes = [1, 32], strides = [1, 1]} : vector<2x32xf32> to vector<1x32xf32>
    %10 = vector.extract_strided_slice %5 {offsets = [1, 0], sizes = [1, 32], strides = [1, 1]} : vector<2x32xf32> to vector<1x32xf32>
    %11 = vector.broadcast %7 : vector<16x1xf32> to vector<16x32xf32>
    %12 = vector.broadcast %9 : vector<1x32xf32> to vector<16x32xf32>
    %13 = arith.mulf %11, %12 : vector<16x32xf32>
    %14 = vector.broadcast %8 : vector<16x1xf32> to vector<16x32xf32>
    %15 = vector.broadcast %10 : vector<1x32xf32> to vector<16x32xf32>
    %16 = arith.mulf %14, %15 : vector<16x32xf32>
    %17 = arith.addf %13, %16 : vector<16x32xf32>
    %18 = vector.broadcast %6 : vector<1x32xf32> to vector<16x32xf32>
    %19 = arith.addf %17, %18 : vector<16x32xf32>
    %20 = vector.shape_cast %9 : vector<1x32xf32> to vector<1x32xf32>
    %21 = vector.broadcast %20 : vector<1x32xf32> to vector<16x32xf32>
    %22 = math.tanh %19 : vector<16x32xf32>
    %23 = arith.mulf %22, %22 : vector<16x32xf32>
    %cst = arith.constant 1.000000e+00 : f32
    %24 = vector.broadcast %cst : f32 to vector<16x32xf32>
    %25 = arith.subf %24, %23 : vector<16x32xf32>
    %26 = arith.mulf %25, %21 : vector<16x32xf32>
    %cst_7 = arith.constant -2.000000e+00 : f32
    %27 = vector.broadcast %cst_7 : f32 to vector<16x32xf32>
    %28 = arith.mulf %27, %22 : vector<16x32xf32>
    %29 = arith.mulf %28, %25 : vector<16x32xf32>
    %30 = arith.mulf %29, %21 : vector<16x32xf32>
    %31 = arith.mulf %30, %21 : vector<16x32xf32>
    %c0_8 = arith.constant 0 : index
    %c0_9 = arith.constant 0 : index
    %32 = vector.load %arg6[%c0_8, %c0_9] : memref<32x32xf32, #tpu.memory_space<vmem>>, vector<32x32xf32>
    %cst_10 = arith.constant dense<0.000000e+00> : vector<16x32xf32>
    %33 = tpu.matmul %22, %32, %cst_10 {dimension_numbers = #tpu.dot_dimension_numbers<[1], [0], [0], [1], [0, 0, 1, 1], [], []>} : vector<16x32xf32>, vector<32x32xf32>, vector<16x32xf32> -> vector<16x32xf32>
    %c0_11 = arith.constant 0 : index
    %c0_12 = arith.constant 0 : index
    %34 = vector.load %arg7[%c0_11, %c0_12] : memref<1x32xf32, #tpu.memory_space<vmem>>, vector<1x32xf32>
    %35 = vector.broadcast %34 : vector<1x32xf32> to vector<16x32xf32>
    %36 = arith.addf %33, %35 : vector<16x32xf32>
    %cst_13 = arith.constant dense<0.000000e+00> : vector<16x32xf32>
    %37 = tpu.matmul %26, %32, %cst_13 {dimension_numbers = #tpu.dot_dimension_numbers<[1], [0], [0], [1], [0, 0, 1, 1], [], []>} : vector<16x32xf32>, vector<32x32xf32>, vector<16x32xf32> -> vector<16x32xf32>
    %cst_14 = arith.constant dense<0.000000e+00> : vector<16x32xf32>
    %38 = tpu.matmul %31, %32, %cst_14 {dimension_numbers = #tpu.dot_dimension_numbers<[1], [0], [0], [1], [0, 0, 1, 1], [], []>} : vector<16x32xf32>, vector<32x32xf32>, vector<16x32xf32> -> vector<16x32xf32>
    %39 = math.tanh %36 : vector<16x32xf32>
    %40 = arith.mulf %39, %39 : vector<16x32xf32>
    %cst_15 = arith.constant 1.000000e+00 : f32
    %41 = vector.broadcast %cst_15 : f32 to vector<16x32xf32>
    %42 = arith.subf %41, %40 : vector<16x32xf32>
    %43 = arith.mulf %42, %37 : vector<16x32xf32>
    %cst_16 = arith.constant -2.000000e+00 : f32
    %44 = vector.broadcast %cst_16 : f32 to vector<16x32xf32>
    %45 = arith.mulf %44, %39 : vector<16x32xf32>
    %46 = arith.mulf %45, %42 : vector<16x32xf32>
    %47 = arith.mulf %46, %37 : vector<16x32xf32>
    %48 = arith.mulf %47, %37 : vector<16x32xf32>
    %49 = arith.mulf %42, %38 : vector<16x32xf32>
    %50 = arith.addf %48, %49 : vector<16x32xf32>
    %c0_17 = arith.constant 0 : index
    %c0_18 = arith.constant 0 : index
    %c0_19 = arith.constant 0 : index
    %51 = vector.load %arg2[%c0_17, %c0_18, %c0_19] : memref<1x16x1xi32, #tpu.memory_space<vmem>>, vector<1x16x1xi32>
    %52 = vector.shape_cast %51 : vector<1x16x1xi32> to vector<16x1xi32>
    %53 = tpu.iota {dimensions = array<i32: 1>} : vector<16x10xi32>
    %54 = vector.broadcast %52 : vector<16x1xi32> to vector<16x10xi32>
    %55 = arith.cmpi eq, %53, %54 : vector<16x10xi32>
    %56 = arith.extui %55 : vector<16x10xi1> to vector<16x10xi32>
    %57 = arith.sitofp %56 : vector<16x10xi32> to vector<16x10xf32>
    %c0_20 = arith.constant 0 : index
    %c0_21 = arith.constant 0 : index
    %58 = vector.load %arg8[%c0_20, %c0_21] : memref<10x32xf32, #tpu.memory_space<vmem>>, vector<10x32xf32>
    %cst_22 = arith.constant dense<0.000000e+00> : vector<16x32xf32>
    %59 = tpu.matmul %57, %58, %cst_22 {dimension_numbers = #tpu.dot_dimension_numbers<[1], [0], [0], [1], [0, 0, 1, 1], [], []>} : vector<16x10xf32>, vector<10x32xf32>, vector<16x32xf32> -> vector<16x32xf32>
    %c0_23 = arith.constant 0 : index
    %c0_24 = arith.constant 0 : index
    %60 = vector.load %arg9[%c0_23, %c0_24] : memref<1x10xf32, #tpu.memory_space<vmem>>, vector<1x10xf32>
    %61 = vector.broadcast %60 : vector<1x10xf32> to vector<16x10xf32>
    %62 = arith.mulf %57, %61 : vector<16x10xf32>
    %cst_25 = arith.constant dense<0.000000e+00> : vector<16xf32>
    %63 = vector.multi_reduction <add>, %62, %cst_25 [1] : vector<16x10xf32> to vector<16xf32>
    %64 = vector.shape_cast %63 : vector<16xf32> to vector<16x1xf32>
    %65 = arith.mulf %39, %59 : vector<16x32xf32>
    %cst_26 = arith.constant dense<0.000000e+00> : vector<16xf32>
    %66 = vector.multi_reduction <add>, %65, %cst_26 [1] : vector<16x32xf32> to vector<16xf32>
    %67 = vector.shape_cast %66 : vector<16xf32> to vector<16x1xf32>
    %68 = arith.addf %67, %64 : vector<16x1xf32>
    %69 = arith.mulf %43, %59 : vector<16x32xf32>
    %cst_27 = arith.constant dense<0.000000e+00> : vector<16xf32>
    %70 = vector.multi_reduction <add>, %69, %cst_27 [1] : vector<16x32xf32> to vector<16xf32>
    %71 = vector.shape_cast %70 : vector<16xf32> to vector<16x1xf32>
    %72 = arith.mulf %50, %59 : vector<16x32xf32>
    %cst_28 = arith.constant dense<0.000000e+00> : vector<16xf32>
    %73 = vector.multi_reduction <add>, %72, %cst_28 [1] : vector<16x32xf32> to vector<16xf32>
    %74 = vector.shape_cast %73 : vector<16xf32> to vector<16x1xf32>
    %c0_i32_29 = arith.constant 0 : i32
    %75 = arith.cmpi eq, %arg0, %c0_i32_29 : i32
    %76 = arith.extui %75 : i1 to i32
    %c0_i32_30 = arith.constant 0 : i32
    %77 = arith.cmpi ne, %76, %c0_i32_30 : i32
    scf.if %77 {
      %c0_35 = arith.constant 0 : index
      %c0_36 = arith.constant 0 : index
      %80 = vector.load %arg10[%c0_35, %c0_36] : memref<16x1xf32, #tpu.memory_space<vmem>>, vector<16x1xf32>
      tpu.vector_store %arg10[%c0_35, %c0_36], %68 {strides = array<i32>} : memref<16x1xf32, #tpu.memory_space<vmem>>, vector<16x1xf32>,
    } else {
    }
    %c0_31 = arith.constant 0 : index
    %c0_32 = arith.constant 0 : index
    %78 = vector.load %arg11[%c0_31, %c0_32] : memref<16x1xf32, #tpu.memory_space<vmem>>, vector<16x1xf32>
    tpu.vector_store %arg11[%c0_31, %c0_32], %71 {strides = array<i32>} : memref<16x1xf32, #tpu.memory_space<vmem>>, vector<16x1xf32>,
    %c0_33 = arith.constant 0 : index
    %c0_34 = arith.constant 0 : index
    %79 = vector.load %arg12[%c0_33, %c0_34] : memref<16x1xf32, #tpu.memory_space<vmem>>, vector<16x1xf32>
    tpu.vector_store %arg12[%c0_33, %c0_34], %74 {strides = array<i32>} : memref<16x1xf32, #tpu.memory_space<vmem>>, vector<16x1xf32>,
    return
  }
  func.func @transform_0(%arg0: i32) -> (i32, i32, i32) {
    %c0_i32 = arith.constant 0 : i32
    %c0_i32_0 = arith.constant 0 : i32
    %c0_i32_1 = arith.constant 0 : i32
    return %arg0, %c0_i32, %c0_i32_0 : i32, i32, i32
  }
  func.func @transform_1(%arg0: i32) -> (i32, i32, i32) {
    %c0_i32 = arith.constant 0 : i32
    %c0_i32_0 = arith.constant 0 : i32
    %c0_i32_1 = arith.constant 0 : i32
    return %arg0, %c0_i32, %c0_i32_0 : i32, i32, i32
  }
  func.func @transform_2(%arg0: i32) -> (i32, i32, i32) {
    %c0_i32 = arith.constant 0 : i32
    %c0_i32_0 = arith.constant 0 : i32
    %c0_i32_1 = arith.constant 0 : i32
    return %arg0, %c0_i32, %c0_i32_0 : i32, i32, i32
  }
  func.func @transform_3(%arg0: i32) -> (i32, i32) {
    %c0_i32 = arith.constant 0 : i32
    %c0_i32_0 = arith.constant 0 : i32
    %c0_i32_1 = arith.constant 0 : i32
    return %c0_i32, %c0_i32_0 : i32, i32
  }
  func.func @transform_4(%arg0: i32) -> (i32, i32) {
    %c0_i32 = arith.constant 0 : i32
    %c0_i32_0 = arith.constant 0 : i32
    %c0_i32_1 = arith.constant 0 : i32
    return %c0_i32, %c0_i32_0 : i32, i32
  }
  func.func @transform_5(%arg0: i32) -> (i32, i32) {
    %c0_i32 = arith.constant 0 : i32
    %c0_i32_0 = arith.constant 0 : i32
    %c0_i32_1 = arith.constant 0 : i32
    return %c0_i32, %c0_i32_0 : i32, i32
  }
  func.func @transform_6(%arg0: i32) -> (i32, i32) {
    %c0_i32 = arith.constant 0 : i32
    %c0_i32_0 = arith.constant 0 : i32
    %c0_i32_1 = arith.constant 0 : i32
    return %c0_i32, %c0_i32_0 : i32, i32
  }
  func.func @transform_7(%arg0: i32) -> (i32, i32) {
    %c0_i32 = arith.constant 0 : i32
    %c0_i32_0 = arith.constant 0 : i32
    %c0_i32_1 = arith.constant 0 : i32
    return %c0_i32, %c0_i32_0 : i32, i32
  }
  func.func @transform_8(%arg0: i32) -> (i32, i32) {
    %c0_i32 = arith.constant 0 : i32
    %c0_i32_0 = arith.constant 0 : i32
    %c0_i32_1 = arith.constant 0 : i32
    return %c0_i32, %c0_i32_0 : i32, i32
  }
  func.func @transform_9(%arg0: i32) -> (i32, i32) {
    %c0_i32 = arith.constant 0 : i32
    %c0_i32_0 = arith.constant 0 : i32
    %c0_i32_1 = arith.constant 0 : i32
    return %c0_i32, %c0_i32_0 : i32, i32
  }
}

</mosaic_0001>

<llo_original>
// kernel: _bsde_device_core.3
$region0: #{_bsde_device_core.3}
  #allocation0 [shape = 'u32[]', space=smem, size = 0x4, offset = 0x4, fixed_abs, tag = 'smem constant byte address 0x4 - core index']
  #allocation1 [shape = 'u32[144,128]{1,0:T(1,128)}', space=vmem, size = 0x12000, scoped, tag = 'internal scratch']
  %s0 = inlined_call_operand.vmem [shape: f32[16,2], index: 0, kind: input, shape index: {}]
  %s1 = inlined_call_operand.vmem [shape: f32[2,32], index: 1, kind: input, shape index: {}]
  %s2 = inlined_call_operand.vmem [shape: f32[1,32], index: 2, kind: input, shape index: {}]
  %s3 = inlined_call_operand.vmem [shape: f32[32,32], index: 3, kind: input, shape index: {}]
  %s4 = inlined_call_operand.vmem [shape: f32[1,32], index: 4, kind: input, shape index: {}]
  %s5 = inlined_call_operand.vmem [shape: f32[32,10], index: 5, kind: input, shape index: {}]
  %s6 = inlined_call_operand.vmem [shape: f32[1,10], index: 6, kind: input, shape index: {}]
  %s7 = inlined_call_operand.vmem [shape: f32[16,10], index: 7, kind: output, shape index: {}]
  %s8 = sld [smem:[#allocation0]]
  $region38: #{_bsde_device_core.3} parent=0
    _
  %s10 = ssub.s32 1, %s8
  %s11 = scalar_select 0, %s10, %s8
  // Predicated region
  $region2: #{_bsde_device_core.3} parent=0 // pred_check
    _
  $region3: #{_bsde_device_core.3} parent=0 // pred_check_branch
    %13 = sbr.rel (0) target = $region5
  $region4: #{_bsde_device_core.3} parent=0 // pred_region
    _
  $region5: #{_bsde_device_core.3} parent=0 // pred_fallthru
    _
  // Predicated region
  $region6: #{_bsde_device_core.3} parent=0 // pred_check
    _
  $region7: #{_bsde_device_core.3} parent=0 // pred_check_branch
    %15 = sbr.rel (0) target = $region9
  $region8: #{_bsde_device_core.3} parent=0 // pred_region
    _
  $region9: #{_bsde_device_core.3} parent=0 // pred_fallthru
    _
  // Predicated region
  $region10: #{_bsde_device_core.3} parent=0 // pred_check
    _
  $region11: #{_bsde_device_core.3} parent=0 // pred_check_branch
    %17 = sbr.rel (0) target = $region13
  $region12: #{_bsde_device_core.3} parent=0 // pred_region
    _
  $region13: #{_bsde_device_core.3} parent=0 // pred_fallthru
    _
  // Predicated region
  $region14: #{_bsde_device_core.3} parent=0 // pred_check
    _
  $region15: #{_bsde_device_core.3} parent=0 // pred_check_branch
    %19 = sbr.rel (0) target = $region17
  $region16: #{_bsde_device_core.3} parent=0 // pred_region
    _
  $region17: #{_bsde_device_core.3} parent=0 // pred_fallthru
    _
  // Predicated region
  $region18: #{_bsde_device_core.3} parent=0 // pred_check
    _
  $region19: #{_bsde_device_core.3} parent=0 // pred_check_branch
    %21 = sbr.rel (0) target = $region21
  $region20: #{_bsde_device_core.3} parent=0 // pred_region
    _
  $region21: #{_bsde_device_core.3} parent=0 // pred_fallthru
    _
  // Predicated region
  $region22: #{_bsde_device_core.3} parent=0 // pred_check
    _
  $region23: #{_bsde_device_core.3} parent=0 // pred_check_branch
    %23 = sbr.rel (0) target = $region25
  $region24: #{_bsde_device_core.3} parent=0 // pred_region
    _
  $region25: #{_bsde_device_core.3} parent=0 // pred_fallthru
    _
  // Predicated region
  $region26: #{_bsde_device_core.3} parent=0 // pred_check
    _
  $region27: #{_bsde_device_core.3} parent=0 // pred_check_branch
    %25 = sbr.rel (0) target = $region29
  $region28: #{_bsde_device_core.3} parent=0 // pred_region
    _
  $region29: #{_bsde_device_core.3} parent=0 // pred_fallthru
    _
  %v26 = vld [vmem:[%s0] sm:$0xff]
  %v27 = vld [vmem:[%s0 + $0x8] sm:$0xff]
  %v28 = vld [vmem:[%s1] sm:$0x3]
  %30 = vset.pattern.permute.xlu0 0
  %31 = vperm.xlu0 %30, %v26
  %v32 = vpop.permute.xlu0 %31
  %35 = vset.pattern.permute.xlu0 0
  %36 = vperm.xlu0 %35, %v27
  %v37 = vpop.permute.xlu0 %36
  %v39 = vlaneseq
  %v40 = vshrl.u32 %v39, 7
  %v41 = vsub.s32 0, %v40
  %v42 = vrot.slane %v28, %v41
  %v43 = vmul.f32 %v32, %v42
  %v44 = vmul.f32 %v37, %v42
  %45 = vset.pattern.permute.xlu0 1
  %46 = vperm.xlu0 %45, %v26
  %v47 = vpop.permute.xlu0 %46
  %49 = vset.pattern.permute.xlu0 1
  %50 = vperm.xlu0 %49, %v27
  %v51 = vpop.permute.xlu0 %50
  %v53 = vlaneseq
  %v54 = vshrl.u32 %v53, 7
  %v55 = vsub.s32 1, %v54
  %v56 = vrot.slane %v28, %v55
  %v57 = vmul.f32 %v47, %v56
  %v58 = vmul.f32 %v51, %v56
  %v59 = vadd.f32 %v43, %v57
  %v60 = vadd.f32 %v44, %v58
  %v61 = vld [vmem:[%s2] sm:$0x1]
  %v63 = vlaneseq
  %v64 = vshrl.u32 %v63, 7
  %v65 = vsub.s32 0, %v64
  %v66 = vrot.slane %v61, %v65
  %v68 = vadd.f32 %v59, %v66
  %v69 = vadd.f32 %v60, %v66
  %v70 = vtanh.pop %v68
  %v71 = vtanh.pop %v69
  %v72 = vld [vmem:[%s3] sm:$0xff]
  %v73 = vld [vmem:[%s3 + $0x8] sm:$0xff]
  %v74 = vld [vmem:[%s3 + $0x10] sm:$0xff]
  %v75 = vld [vmem:[%s3 + $0x18] sm:$0xff]
  %v76 = vld [vmem:[%s4] sm:$0x1]
  %v78 = vlaneseq
  %v79 = vshrl.u32 %v78, 7
  %v80 = vsub.s32 0, %v79
  %v81 = vrot.slane %v76, %v80
  %vm83 = vcmask 261120
  %v85 = vsel %vm83, %v70, 0
  %v88 = vsel %vm83, %v71, 0
  %90 = vmatprep.subr.mxu0 0.0
  %91 = vmatpush1.msra.mxu0 0.0
  %92 = vmatprep.subr.mxu0 0.0
  %93 = vmatpush1.msra.mxu0 0.0
  %94 = vmatprep.subr.mxu0 0.0
  %95 = vmatpush1.msra.mxu0 0.0
  %96 = vmatprep.subr.mxu0 0.0
  %97 = vmatpush1.msra.mxu0 0.0
  %98 = vmatprep.subr.mxu0 0.0
  %99 = vmatpush1.msra.mxu0 0.0
  %100 = vmatprep.subr.mxu0 0.0
  %101 = vmatpush1.msra.mxu0 0.0
  %102 = vmatprep.subr.mxu0 0.0
  %103 = vmatpush1.msra.mxu0 0.0
  %104 = vmatprep.subr.mxu0 0.0
  %105 = vmatpush1.msra.mxu0 0.0
  %106 = vmatprep.subr.mxu0 0.0
  %107 = vmatpush1.msra.mxu0 0.0
  %108 = vmatprep.subr.mxu0 0.0
  %109 = vmatpush1.msra.mxu0 0.0
  %110 = vmatprep.subr.mxu0 0.0
  %111 = vmatpush1.msra.mxu0 0.0
  %112 = vmatprep.subr.mxu0 0.0
  %113 = vmatpush1.msra.mxu0 0.0
  %114 = vmatprep.subr.mxu0 0.0
  %115 = vmatpush1.msra.mxu0 %v75
  %116 = vmatprep.subr.mxu0 0.0
  %117 = vmatpush1.msra.mxu0 %v74
  %118 = vmatprep.subr.mxu0 0.0
  %119 = vmatpush1.msra.mxu0 %v73
  %120 = vmatprep.subr.mxu0 0.0
  %121 = vmatpush1.msra.mxu0 %v72
  %122 = vmatprep.subr.mxu0 0.0
  %123 = vmatpush2.msra.mxu0 0.0
  %124 = vmatprep.subr.mxu0 0.0
  %125 = vmatpush2.msra.mxu0 0.0
  %126 = vmatprep.subr.mxu0 0.0
  %127 = vmatpush2.msra.mxu0 0.0
  %128 = vmatprep.subr.mxu0 0.0
  %129 = vmatpush2.msra.mxu0 0.0
  %130 = vmatprep.subr.mxu0 0.0
  %131 = vmatpush2.msra.mxu0 0.0
  %132 = vmatprep.subr.mxu0 0.0
  %133 = vmatpush2.msra.mxu0 0.0
  %134 = vmatprep.subr.mxu0 0.0
  %135 = vmatpush2.msra.mxu0 0.0
  %136 = vmatprep.subr.mxu0 0.0
  %137 = vmatpush2.msra.mxu0 0.0
  %138 = vmatprep.subr.mxu0 0.0
  %139 = vmatpush2.msra.mxu0 0.0
  %140 = vmatprep.subr.mxu0 0.0
  %141 = vmatpush2.msra.mxu0 0.0
  %142 = vmatprep.subr.mxu0 0.0
  %143 = vmatpush2.msra.mxu0 0.0
  %144 = vmatprep.subr.mxu0 0.0
  %145 = vmatpush2.msra.mxu0 0.0
  %146 = vmatprep.subr.mxu0 0.0
  %147 = vmatpush2.msra.mxu0 0.0
  %148 = vmatprep.subr.mxu0 0.0
  %149 = vmatpush2.msra.mxu0 0.0
  %150 = vmatprep.subr.mxu0 0.0
  %151 = vmatpush2.msra.mxu0 0.0
  %152 = vmatprep.subr.mxu0 0.0
  %153 = vmatpush2.msra.mxu0 0.0
  %154 = vmatprep.mubr.f32.mxu0 0.0
  %155 = vmatmul.mubr.f32.gmra.mxu0 %v85
  %v156 = vpop.f32.mrf.mxu0
  %v157 = vadd.f32 %v81, %v156
  %v158 = vpop.f32.mrf.mxu0
  %159 = vmatprep.mubr.f32.mxu0 0.0
  %160 = vmatmul.mubr.f32.gmra.mxu0 %v88
  %v161 = vpop.f32.mrf.mxu0
  %v162 = vadd.f32 %v81, %v161
  %v163 = vpop.f32.mrf.mxu0
  %164 = vdwg.mxu0
  %v165 = vtanh.pop %v157
  %v166 = vtanh.pop %v162
  %v167 = vld [vmem:[%s5] sm:$0xff]
  %v168 = vld [vmem:[%s5 + $0x8] sm:$0xff]
  %v169 = vld [vmem:[%s5 + $0x10] sm:$0xff]
  %v170 = vld [vmem:[%s5 + $0x18] sm:$0xff]
  %v171 = vld [vmem:[%s6] sm:$0x1]
  %v173 = vlaneseq
  %v174 = vshrl.u32 %v173, 7
  %v175 = vsub.s32 0, %v174
  %v176 = vrot.slane %v171, %v175
  %v179 = vsel %vm83, %v165, 0
  %v182 = vsel %vm83, %v166, 0
  %184 = vmatprep.subr.mxu0 0.0
  %185 = vmatpush1.msra.mxu0 0.0
  %186 = vmatprep.subr.mxu0 0.0
  %187 = vmatpush1.msra.mxu0 0.0
  %188 = vmatprep.subr.mxu0 0.0
  %189 = vmatpush1.msra.mxu0 0.0
  %190 = vmatprep.subr.mxu0 0.0
  %191 = vmatpush1.msra.mxu0 0.0
  %192 = vmatprep.subr.mxu0 0.0
  %193 = vmatpush1.msra.mxu0 0.0
  %194 = vmatprep.subr.mxu0 0.0
  %195 = vmatpush1.msra.mxu0 0.0
  %196 = vmatprep.subr.mxu0 0.0
  %197 = vmatpush1.msra.mxu0 0.0
  %198 = vmatprep.subr.mxu0 0.0
  %199 = vmatpush1.msra.mxu0 0.0
  %200 = vmatprep.subr.mxu0 0.0
  %201 = vmatpush1.msra.mxu0 0.0
  %202 = vmatprep.subr.mxu0 0.0
  %203 = vmatpush1.msra.mxu0 0.0
  %204 = vmatprep.subr.mxu0 0.0
  %205 = vmatpush1.msra.mxu0 0.0
  %206 = vmatprep.subr.mxu0 0.0
  %207 = vmatpush1.msra.mxu0 0.0
  %208 = vmatprep.subr.mxu0 0.0
  %209 = vmatpush1.msra.mxu0 %v170
  %210 = vmatprep.subr.mxu0 0.0
  %211 = vmatpush1.msra.mxu0 %v169
  %212 = vmatprep.subr.mxu0 0.0
  %213 = vmatpush1.msra.mxu0 %v168
  %214 = vmatprep.subr.mxu0 0.0
  %215 = vmatpush1.msra.mxu0 %v167
  %216 = vmatprep.subr.mxu0 0.0
  %217 = vmatpush2.msra.mxu0 0.0
  %218 = vmatprep.subr.mxu0 0.0
  %219 = vmatpush2.msra.mxu0 0.0
  %220 = vmatprep.subr.mxu0 0.0
  %221 = vmatpush2.msra.mxu0 0.0
  %222 = vmatprep.subr.mxu0 0.0
  %223 = vmatpush2.msra.mxu0 0.0
  %224 = vmatprep.subr.mxu0 0.0
  %225 = vmatpush2.msra.mxu0 0.0
  %226 = vmatprep.subr.mxu0 0.0
  %227 = vmatpush2.msra.mxu0 0.0
  %228 = vmatprep.subr.mxu0 0.0
  %229 = vmatpush2.msra.mxu0 0.0
  %230 = vmatprep.subr.mxu0 0.0
  %231 = vmatpush2.msra.mxu0 0.0
  %232 = vmatprep.subr.mxu0 0.0
  %233 = vmatpush2.msra.mxu0 0.0
  %234 = vmatprep.subr.mxu0 0.0
  %235 = vmatpush2.msra.mxu0 0.0
  %236 = vmatprep.subr.mxu0 0.0
  %237 = vmatpush2.msra.mxu0 0.0
  %238 = vmatprep.subr.mxu0 0.0
  %239 = vmatpush2.msra.mxu0 0.0
  %240 = vmatprep.subr.mxu0 0.0
  %241 = vmatpush2.msra.mxu0 0.0
  %242 = vmatprep.subr.mxu0 0.0
  %243 = vmatpush2.msra.mxu0 0.0
  %244 = vmatprep.subr.mxu0 0.0
  %245 = vmatpush2.msra.mxu0 0.0
  %246 = vmatprep.subr.mxu0 0.0
  %247 = vmatpush2.msra.mxu0 0.0
  %248 = vmatprep.mubr.f32.mxu0 0.0
  %249 = vmatmul.mubr.f32.gmra.mxu0 %v179
  %v250 = vpop.f32.mrf.mxu0
  %v251 = vadd.f32 %v176, %v250
  %v252 = vpop.f32.mrf.mxu0
  %253 = vmatprep.mubr.f32.mxu0 0.0
  %254 = vmatmul.mubr.f32.gmra.mxu0 %v182
  %v255 = vpop.f32.mrf.mxu0
  %v256 = vadd.f32 %v176, %v255
  %v257 = vpop.f32.mrf.mxu0
  %258 = vdwg.mxu0
  %vm259 = vcmask 80896
  %260 = vst.msk [vmem:[%s7] sm:$0xff] %vm259, %v251
  %261 = vst.msk [vmem:[%s7 + $0x8] sm:$0xff] %vm259, %v256
  // Predicated region
  $region30: #{_bsde_device_core.3} parent=0 // pred_check
    _
  $region31: #{_bsde_device_core.3} parent=0 // pred_check_branch
    %263 = sbr.rel (0) target = $region33
  $region32: #{_bsde_device_core.3} parent=0 // pred_region
    _
  $region33: #{_bsde_device_core.3} parent=0 // pred_fallthru
    _
  // Predicated region
  $region34: #{_bsde_device_core.3} parent=0 // pred_check
    _
  $region35: #{_bsde_device_core.3} parent=0 // pred_check_branch
    %265 = sbr.rel (0) target = $region37
  $region36: #{_bsde_device_core.3} parent=0 // pred_region
    _
  $region37: #{_bsde_device_core.3} parent=0 // pred_fallthru
    _

// kernel: _bsde_device_core.2
$region0: #{_bsde_device_core.2}
  #allocation0 [shape = 'u32[]', space=smem, size = 0x4, offset = 0x4, fixed_abs, tag = 'smem constant byte address 0x4 - core index']
  #allocation1 [shape = 'u32[144,128]{1,0:T(1,128)}', space=vmem, size = 0x12000, scoped, tag = 'internal scratch']
  #allocation2 [shape = 'f32[16,1]{1,0:T(8,128)}', space=vmem, size = 0x2000, scoped, tag = 'scratch operand']
  #allocation3 [shape = 'f32[16,1]{1,0:T(8,128)}', space=vmem, size = 0x2000, scoped, tag = 'scratch operand']
  %s0 = inlined_call_operand.vmem [shape: f32[9,16,2], index: 0, kind: input, shape index: {}]
  %s1 = inlined_call_operand.vmem [shape: s32[9,16,1], index: 1, kind: input, shape index: {}]
  %s2 = inlined_call_operand.vmem [shape: f32[9,16,1], index: 2, kind: input, shape index: {}]
  %s3 = inlined_call_operand.vmem [shape: f32[2,32], index: 3, kind: input, shape index: {}]
  %s4 = inlined_call_operand.vmem [shape: f32[1,32], index: 4, kind: input, shape index: {}]
  %s5 = inlined_call_operand.vmem [shape: f32[32,32], index: 5, kind: input, shape index: {}]
  %s6 = inlined_call_operand.vmem [shape: f32[1,32], index: 6, kind: input, shape index: {}]
  %s7 = inlined_call_operand.vmem [shape: f32[10,32], index: 7, kind: input, shape index: {}]
  %s8 = inlined_call_operand.vmem [shape: f32[1,10], index: 8, kind: input, shape index: {}]
  %s9 = inlined_call_operand.vmem [shape: f32[16,1], index: 9, kind: output, shape index: {}]
  %s10 = sld [smem:[#allocation0]]
  $region77: #{_bsde_device_core.2} parent=0
    _
  %s12 = ssub.s32 1, %s10
  %s13 = scalar_select 0, %s12, %s10
  loop: start=0, step=1, limit=11
  $region2: #{_bsde_device_core.2} parent=0 // loop_pre_header
    _
  $region3: #{_bsde_device_core.2} parent=0 // loop_header
    %s15 = sphi 0, %s19
    %p16 = scmp.ge.s32.totalorder %s15, 11
    %s25 = sphi 0, %s27
    %s28 = sphi 0, %s25
    %s29 = sphi 0, %s28
    %s45 = sphi 0, %s29
    %s51 = sphi 0, %s53
    %s54 = sphi 0, %s51
    %s55 = sphi 0, %s54
    %s71 = sphi 0, %s55
    %s77 = sphi 0, %s79
    %s80 = sphi 0, %s77
    %s81 = sphi 0, %s80
    %s97 = sphi 0, %s81
    %s101 = sphi 0, %s101
    %s103 = sphi 0, %s101
    %s104 = sphi 0, %s103
    %s118 = sphi 0, %s104
    %s122 = sphi 0, %s122
    %s124 = sphi 0, %s122
    %s125 = sphi 0, %s124
    %s139 = sphi 0, %s125
    %s143 = sphi 0, %s143
    %s145 = sphi 0, %s143
    %s146 = sphi 0, %s145
    %s160 = sphi 0, %s146
    %s164 = sphi 0, %s164
    %s166 = sphi 0, %s164
    %s167 = sphi 0, %s166
    %s181 = sphi 0, %s167
    %s185 = sphi 0, %s185
    %s187 = sphi 0, %s185
    %s188 = sphi 0, %s187
    %s202 = sphi 0, %s188
    %s206 = sphi 0, %s206
    %s208 = sphi 0, %s206
    %s209 = sphi 0, %s208
    %s223 = sphi 0, %s209
    %s227 = sphi 0, %s227
    %s229 = sphi 0, %s227
    %s230 = sphi 0, %s229
    %s244 = sphi 0, %s230
  $region4: #{_bsde_device_core.2} parent=0 // loop_header_branch
    %18 = sbr.rel (%p16) target = $region8
  $region5: #{_bsde_device_core.2} parent=0 // loop_body
    %s20 = ssub.s32 %s15, 1
    %s21 = ssub.s32 %s15, 2
    %s22 = sadd.s32 %s15, 1
    %s23 = ssub.s32 %s15, %s22
    %p24 = scmp.eq.s32.totalorder %s23, 0
    %s26 = sadd.s32 %s25, 1
    %s27 = scalar_select %p24, %s25, %s26
    %p30 = pneg %p24
    %p31 = scmp.eq.s32.totalorder %s15, 8
    %p32 = por %p30, %p31
    %p33 = scmp.ne.s32.totalorder %s25, %s28
    %p34 = scmp.eq.s32.totalorder %s15, 0
    %p35 = por %p33, %p34
    %p36 = scmp.ne.s32.totalorder %s25, %s28
    %p37 = scmp.eq.s32.totalorder %s20, 8
    %p38 = por %p36, %p37
    %p39 = scmp.ne.s32.totalorder %s28, %s29
    %p40 = scmp.eq.s32.totalorder %s20, 0
    %p41 = por %p39, %p40
    %p42 = scmp.ne.s32.totalorder %s28, %s29
    %p43 = scmp.eq.s32.totalorder %s21, 8
    %p44 = por %p42, %p43
    %p46 = scmp.ne.s32.totalorder %s29, %s45
    %p47 = scmp.eq.s32.totalorder %s21, 0
    %p48 = por %p46, %p47
    %s49 = ssub.s32 %s15, %s22
    %p50 = scmp.eq.s32.totalorder %s49, 0
    %s52 = sadd.s32 %s51, 1
    %s53 = scalar_select %p50, %s51, %s52
    %p56 = pneg %p50
    %p57 = scmp.eq.s32.totalorder %s15, 8
    %p58 = por %p56, %p57
    %p59 = scmp.ne.s32.totalorder %s51, %s54
    %p60 = scmp.eq.s32.totalorder %s15, 0
    %p61 = por %p59, %p60
    %p62 = scmp.ne.s32.totalorder %s51, %s54
    %p63 = scmp.eq.s32.totalorder %s20, 8
    %p64 = por %p62, %p63
    %p65 = scmp.ne.s32.totalorder %s54, %s55
    %p66 = scmp.eq.s32.totalorder %s20, 0
    %p67 = por %p65, %p66
    %p68 = scmp.ne.s32.totalorder %s54, %s55
    %p69 = scmp.eq.s32.totalorder %s21, 8
    %p70 = por %p68, %p69
    %p72 = scmp.ne.s32.totalorder %s55, %s71
    %p73 = scmp.eq.s32.totalorder %s21, 0
    %p74 = por %p72, %p73
    %s75 = ssub.s32 %s15, %s22
    %p76 = scmp.eq.s32.totalorder %s75, 0
    %s78 = sadd.s32 %s77, 1
    %s79 = scalar_select %p76, %s77, %s78
    %p82 = pneg %p76
    %p83 = scmp.eq.s32.totalorder %s15, 8
    %p84 = por %p82, %p83
    %p85 = scmp.ne.s32.totalorder %s77, %s80
    %p86 = scmp.eq.s32.totalorder %s15, 0
    %p87 = por %p85, %p86
    %p88 = scmp.ne.s32.totalorder %s77, %s80
    %p89 = scmp.eq.s32.totalorder %s20, 8
    %p90 = por %p88, %p89
    %p91 = scmp.ne.s32.totalorder %s80, %s81
    %p92 = scmp.eq.s32.totalorder %s20, 0
    %p93 = por %p91, %p92
    %p94 = scmp.ne.s32.totalorder %s80, %s81
    %p95 = scmp.eq.s32.totalorder %s21, 8
    %p96 = por %p94, %p95
    %p98 = scmp.ne.s32.totalorder %s81, %s97
    %p99 = scmp.eq.s32.totalorder %s21, 0
    %p100 = por %p98, %p99
    %s102 = sadd.s32 %s101, 1
    %p105 = scmp.eq.s32.totalorder %s15, 8
    %p106 = scmp.ne.s32.totalorder %s101, %s103
    %p107 = scmp.eq.s32.totalorder %s15, 0
    %p108 = por %p106, %p107
    %p109 = scmp.ne.s32.totalorder %s101, %s103
    %p110 = scmp.eq.s32.totalorder %s20, 8
    %p111 = por %p109, %p110
    %p112 = scmp.ne.s32.totalorder %s103, %s104
    %p113 = scmp.eq.s32.totalorder %s20, 0
    %p114 = por %p112, %p113
    %p115 = scmp.ne.s32.totalorder %s103, %s104
    %p116 = scmp.eq.s32.totalorder %s21, 8
    %p117 = por %p115, %p116
    %p119 = scmp.ne.s32.totalorder %s104, %s118
    %p120 = scmp.eq.s32.totalorder %s21, 0
    %p121 = por %p119, %p120
    %s123 = sadd.s32 %s122, 1
    %p126 = scmp.eq.s32.totalorder %s15, 8
    %p127 = scmp.ne.s32.totalorder %s122, %s124
    %p128 = scmp.eq.s32.totalorder %s15, 0
    %p129 = por %p127, %p128
    %p130 = scmp.ne.s32.totalorder %s122, %s124
    %p131 = scmp.eq.s32.totalorder %s20, 8
    %p132 = por %p130, %p131
    %p133 = scmp.ne.s32.totalorder %s124, %s125
    %p134 = scmp.eq.s32.totalorder %s20, 0
    %p135 = por %p133, %p134
    %p136 = scmp.ne.s32.totalorder %s124, %s125
    %p137 = scmp.eq.s32.totalorder %s21, 8
    %p138 = por %p136, %p137
    %p140 = scmp.ne.s32.totalorder %s125, %s139
    %p141 = scmp.eq.s32.totalorder %s21, 0
    %p142 = por %p140, %p141
    %s144 = sadd.s32 %s143, 1
    %p147 = scmp.eq.s32.totalorder %s15, 8
    %p148 = scmp.ne.s32.totalorder %s143, %s145
    %p149 = scmp.eq.s32.totalorder %s15, 0
    %p150 = por %p148, %p149
    %p151 = scmp.ne.s32.totalorder %s143, %s145
    %p152 = scmp.eq.s32.totalorder %s20, 8
    %p153 = por %p151, %p152
    %p154 = scmp.ne.s32.totalorder %s145, %s146
    %p155 = scmp.eq.s32.totalorder %s20, 0
    %p156 = por %p154, %p155
    %p157 = scmp.ne.s32.totalorder %s145, %s146
    %p158 = scmp.eq.s32.totalorder %s21, 8
    %p159 = por %p157, %p158
    %p161 = scmp.ne.s32.totalorder %s146, %s160
    %p162 = scmp.eq.s32.totalorder %s21, 0
    %p163 = por %p161, %p162
    %s165 = sadd.s32 %s164, 1
    %p168 = scmp.eq.s32.totalorder %s15, 8
    %p169 = scmp.ne.s32.totalorder %s164, %s166
    %p170 = scmp.eq.s32.totalorder %s15, 0
    %p171 = por %p169, %p170
    %p172 = scmp.ne.s32.totalorder %s164, %s166
    %p173 = scmp.eq.s32.totalorder %s20, 8
    %p174 = por %p172, %p173
    %p175 = scmp.ne.s32.totalorder %s166, %s167
    %p176 = scmp.eq.s32.totalorder %s20, 0
    %p177 = por %p175, %p176
    %p178 = scmp.ne.s32.totalorder %s166, %s167
    %p179 = scmp.eq.s32.totalorder %s21, 8
    %p180 = por %p178, %p179
    %p182 = scmp.ne.s32.totalorder %s167, %s181
    %p183 = scmp.eq.s32.totalorder %s21, 0
    %p184 = por %p182, %p183
    %s186 = sadd.s32 %s185, 1
    %p189 = scmp.eq.s32.totalorder %s15, 8
    %p190 = scmp.ne.s32.totalorder %s185, %s187
    %p191 = scmp.eq.s32.totalorder %s15, 0
    %p192 = por %p190, %p191
    %p193 = scmp.ne.s32.totalorder %s185, %s187
    %p194 = scmp.eq.s32.totalorder %s20, 8
    %p195 = por %p193, %p194
    %p196 = scmp.ne.s32.totalorder %s187, %s188
    %p197 = scmp.eq.s32.totalorder %s20, 0
    %p198 = por %p196, %p197
    %p199 = scmp.ne.s32.totalorder %s187, %s188
    %p200 = scmp.eq.s32.totalorder %s21, 8
    %p201 = por %p199, %p200
    %p203 = scmp.ne.s32.totalorder %s188, %s202
    %p204 = scmp.eq.s32.totalorder %s21, 0
    %p205 = por %p203, %p204
    %s207 = sadd.s32 %s206, 1
    %p210 = scmp.eq.s32.totalorder %s15, 8
    %p211 = scmp.ne.s32.totalorder %s206, %s208
    %p212 = scmp.eq.s32.totalorder %s15, 0
    %p213 = por %p211, %p212
    %p214 = scmp.ne.s32.totalorder %s206, %s208
    %p215 = scmp.eq.s32.totalorder %s20, 8
    %p216 = por %p214, %p215
    %p217 = scmp.ne.s32.totalorder %s208, %s209
    %p218 = scmp.eq.s32.totalorder %s20, 0
    %p219 = por %p217, %p218
    %p220 = scmp.ne.s32.totalorder %s208, %s209
    %p221 = scmp.eq.s32.totalorder %s21, 8
    %p222 = por %p220, %p221
    %p224 = scmp.ne.s32.totalorder %s209, %s223
    %p225 = scmp.eq.s32.totalorder %s21, 0
    %p226 = por %p224, %p225
    %s228 = sadd.s32 %s227, 1
    %p231 = scmp.eq.s32.totalorder %s15, 8
    %p232 = scmp.ne.s32.totalorder %s227, %s229
    %p233 = scmp.eq.s32.totalorder %s15, 0
    %p234 = por %p232, %p233
    %p235 = scmp.ne.s32.totalorder %s227, %s229
    %p236 = scmp.eq.s32.totalorder %s20, 8
    %p237 = por %p235, %p236
    %p238 = scmp.ne.s32.totalorder %s229, %s230
    %p239 = scmp.eq.s32.totalorder %s20, 0
    %p240 = por %p238, %p239
    %p241 = scmp.ne.s32.totalorder %s229, %s230
    %p242 = scmp.eq.s32.totalorder %s21, 8
    %p243 = por %p241, %p242
    %p245 = scmp.ne.s32.totalorder %s230, %s244
    %p246 = scmp.eq.s32.totalorder %s21, 0
    %p247 = por %p245, %p246
    %p248 = scmp.le.s32.totalorder 1, %s15
    %p249 = scmp.lt.s32.totalorder %s15, 10
    %p250 = pnand %p248, %p249
    %p251 = pneg %p250
    // Predicated region
    $region9: #{_bsde_device_core.2} parent=5 // pred_check
      _
    $region10: #{_bsde_device_core.2} parent=5 // pred_check_branch
      %253 = sbr.rel (%p250) target = $region12
    $region11: #{_bsde_device_core.2} parent=5 // pred_region
      %s254 = ssub.s32 %s15, 1
      // Predicated region
      $region13: #{_bsde_device_core.2} parent=11 // pred_check
        %p255 = pneg %p114
      $region14: #{_bsde_device_core.2} parent=11 // pred_check_branch
        %257 = sbr.rel (%p255) target = $region16
      $region15: #{_bsde_device_core.2} parent=11 // pred_region
        _
      $region16: #{_bsde_device_core.2} parent=11 // pred_fallthru
        _
      // Predicated region
      $region17: #{_bsde_device_core.2} parent=11 // pred_check
        %p258 = pneg %p135
      $region18: #{_bsde_device_core.2} parent=11 // pred_check_branch
        %260 = sbr.rel (%p258) target = $region20
      $region19: #{_bsde_device_core.2} parent=11 // pred_region
        _
      $region20: #{_bsde_device_core.2} parent=11 // pred_fallthru
        _
      // Predicated region
      $region21: #{_bsde_device_core.2} parent=11 // pred_check
        %p261 = pneg %p156
      $region22: #{_bsde_device_core.2} parent=11 // pred_check_branch
        %263 = sbr.rel (%p261) target = $region24
      $region23: #{_bsde_device_core.2} parent=11 // pred_region
        _
      $region24: #{_bsde_device_core.2} parent=11 // pred_fallthru
        _
      // Predicated region
      $region25: #{_bsde_device_core.2} parent=11 // pred_check
        %p264 = pneg %p177
      $region26: #{_bsde_device_core.2} parent=11 // pred_check_branch
        %266 = sbr.rel (%p264) target = $region28
      $region27: #{_bsde_device_core.2} parent=11 // pred_region
        _
      $region28: #{_bsde_device_core.2} parent=11 // pred_fallthru
        _
      // Predicated region
      $region29: #{_bsde_device_core.2} parent=11 // pred_check
        %p267 = pneg %p198
      $region30: #{_bsde_device_core.2} parent=11 // pred_check_branch
        %269 = sbr.rel (%p267) target = $region32
      $region31: #{_bsde_device_core.2} parent=11 // pred_region
        _
      $region32: #{_bsde_device_core.2} parent=11 // pred_fallthru
        _
      // Predicated region
      $region33: #{_bsde_device_core.2} parent=11 // pred_check
        %p270 = pneg %p219
      $region34: #{_bsde_device_core.2} parent=11 // pred_check_branch
        %272 = sbr.rel (%p270) target = $region36
      $region35: #{_bsde_device_core.2} parent=11 // pred_region
        _
      $region36: #{_bsde_device_core.2} parent=11 // pred_fallthru
        _
    $region12: #{_bsde_device_core.2} parent=5 // pred_fallthru
      _
    %p273 = scmp.lt.s32.totalorder %s15, 9
    // Predicated region
    $region37: #{_bsde_device_core.2} parent=5 // pred_check
      %p274 = pneg %p273
    $region38: #{_bsde_device_core.2} parent=5 // pred_check_branch
      %276 = sbr.rel (%p274) target = $region40
    $region39: #{_bsde_device_core.2} parent=5 // pred_region
      // Predicated region
      $region41: #{_bsde_device_core.2} parent=39 // pred_check
        %p277 = pneg %p35
      $region42: #{_bsde_device_core.2} parent=39 // pred_check_branch
        %279 = sbr.rel (%p277) target = $region44
      $region43: #{_bsde_device_core.2} parent=39 // pred_region
        %p280 = scmp.lt.s32.totalorder %s15, 8
        %s281 = scalar_select %p280, %s15, 8
        %s282 = smul.addr %s281, 2
        %s283 = smul.addr %s282, 8
        %s284 = scalar_lea.vmem %s0, %s283
      $region44: #{_bsde_device_core.2} parent=39 // pred_fallthru
        _
      // Predicated region
      $region45: #{_bsde_device_core.2} parent=39 // pred_check
        %p285 = pneg %p61
      $region46: #{_bsde_device_core.2} parent=39 // pred_check_branch
        %287 = sbr.rel (%p285) target = $region48
      $region47: #{_bsde_device_core.2} parent=39 // pred_region
        %p288 = scmp.lt.s32.totalorder %s15, 8
        %s289 = scalar_select %p288, %s15, 8
        %s290 = smul.addr %s289, 2
        %s291 = smul.addr %s290, 8
        %s292 = scalar_lea.vmem %s1, %s291
      $region48: #{_bsde_device_core.2} parent=39 // pred_fallthru
        _
      // Predicated region
      $region49: #{_bsde_device_core.2} parent=39 // pred_check
        %p293 = pneg %p87
      $region50: #{_bsde_device_core.2} parent=39 // pred_check_branch
        %295 = sbr.rel (%p293) target = $region52
      $region51: #{_bsde_device_core.2} parent=39 // pred_region
        %p296 = scmp.lt.s32.totalorder %s15, 8
        %s297 = scalar_select %p296, %s15, 8
        %s298 = smul.addr %s297, 2
        %s299 = smul.addr %s298, 8
        %s300 = scalar_lea.vmem %s2, %s299
      $region52: #{_bsde_device_core.2} parent=39 // pred_fallthru
        _
    $region40: #{_bsde_device_core.2} parent=5 // pred_fallthru
      _
    %p301 = scmp.le.s32.totalorder 1, %s15
    %p302 = scmp.lt.s32.totalorder %s15, 10
    %p303 = pnand %p301, %p302
    %p304 = pneg %p303
    // Predicated region
    $region53: #{_bsde_device_core.2} parent=5 // pred_check
      _
    $region54: #{_bsde_device_core.2} parent=5 // pred_check_branch
      %306 = sbr.rel (%p303) target = $region56
    $region55: #{_bsde_device_core.2} parent=5 // pred_region
      %s307 = ssub.s32 %s15, 1
      %p308 = scmp.lt.s32.totalorder %s20, 8
      %s309 = scalar_select %p308, %s20, 8
      %s310 = smul.addr %s309, 2
      %s311 = smul.addr %s310, 8
      %s312 = scalar_lea.vmem %s0, %s311
      %p313 = pneg %p41
      %p314 = pneg %p38
      %p315 = scmp.lt.s32.totalorder %s20, 8
      %s316 = scalar_select %p315, %s20, 8
      %s317 = smul.addr %s316, 2
      %s318 = smul.addr %s317, 8
      %s319 = scalar_lea.vmem %s1, %s318
      %p320 = pneg %p67
      %p321 = pneg %p64
      %p322 = scmp.lt.s32.totalorder %s20, 8
      %s323 = scalar_select %p322, %s20, 8
      %s324 = smul.addr %s323, 2
      %s325 = smul.addr %s324, 8
      %s326 = scalar_lea.vmem %s2, %s325
      %p327 = pneg %p93
      %p328 = pneg %p90
      %p329 = pneg %p114
      %p330 = pneg %p111
      %p331 = pneg %p135
      %p332 = pneg %p132
      %p333 = pneg %p156
      %p334 = pneg %p153
      %p335 = pneg %p177
      %p336 = pneg %p174
      %p337 = pneg %p198
      %p338 = pneg %p195
      %p339 = pneg %p219
      %p340 = pneg %p216
      %p341 = pneg %p240
      %p342 = pneg %p237
      %p343 = scmp.lt.s32.totalorder %s20, 8
      %s344 = scalar_select %p343, %s20, 8
      %s345 = smul.addr %s344, 2
      %s346 = smul.addr %s345, 8
      %s347 = scalar_lea.vmem %s0, %s346
      %p348 = scmp.lt.s32.totalorder %s20, 8
      %s349 = scalar_select %p348, %s20, 8
      %s350 = smul.addr %s349, 2
      %s351 = smul.addr %s350, 8
      %s352 = scalar_lea.vmem %s1, %s351
      %p353 = scmp.lt.s32.totalorder %s20, 8
      %s354 = scalar_select %p353, %s20, 8
      %s355 = smul.addr %s354, 2
      %s356 = smul.addr %s355, 8
      %s357 = scalar_lea.vmem %s2, %s356
      %p358 = scmp.gt.s32.totalorder %s20, 0
      // Predicated region
      $region57: #{_bsde_device_core.2} parent=55 // pred_check
        %p359 = pneg %p358
      $region58: #{_bsde_device_core.2} parent=55 // pred_check_branch
        %361 = sbr.rel (%p359) target = $region60
      $region59: #{_bsde_device_core.2} parent=55 // pred_region
        %v362 = vld [vmem:[%s9] sm:$0xff]
        %v363 = vld [vmem:[%s9 + $0x8] sm:$0xff]
        %v364 = vld [vmem:[#allocation2] sm:$0xff]
        %v365 = vld [vmem:[#allocation2 + $0x8] sm:$0xff]
        %v366 = vld [vmem:[%s357] sm:$0xff]
        %v367 = vld [vmem:[%s357 + $0x8] sm:$0xff]
        %v368 = vmul.f32 %v364, %v366
        %v369 = vmul.f32 %v365, %v367
        %v370 = vsub.f32 %v362, %v368
        %v371 = vsub.f32 %v363, %v369
        %v372 = vld [vmem:[#allocation3] sm:$0xff]
        %v373 = vld [vmem:[#allocation3 + $0x8] sm:$0xff]
        %v374 = vmul.f32 %v372, 0.0625
        %v375 = vmul.f32 %v373, 0.0625
        %v376 = vsub.f32 %v370, %v374
        %v377 = vsub.f32 %v371, %v375
        %vm378 = vcmask 7168
        %379 = vst.msk [vmem:[%s9] sm:$0xff] %vm378, %v376
        %380 = vst.msk [vmem:[%s9 + $0x8] sm:$0xff] %vm378, %v377
      $region60: #{_bsde_device_core.2} parent=55 // pred_fallthru
        _
      %v381 = vld [vmem:[%s347] sm:$0xff]
      %v382 = vld [vmem:[%s347 + $0x8] sm:$0xff]
      %v383 = vld [vmem:[%s3] sm:$0x3]
      %v384 = vld [vmem:[%s4] sm:$0x1]
      %386 = vset.pattern.permute.xlu0 0
      %387 = vperm.xlu0 %386, %v381
      %v388 = vpop.permute.xlu0 %387
      %391 = vset.pattern.permute.xlu0 0
      %392 = vperm.xlu0 %391, %v382
      %v393 = vpop.permute.xlu0 %392
      %v395 = vlaneseq
      %v396 = vshrl.u32 %v395, 7
      %v397 = vsub.s32 0, %v396
      %v398 = vrot.slane %v383, %v397
      %v399 = vmul.f32 %v388, %v398
      %v400 = vmul.f32 %v393, %v398
      %401 = vset.pattern.permute.xlu0 1
      %402 = vperm.xlu0 %401, %v381
      %v403 = vpop.permute.xlu0 %402
      %405 = vset.pattern.permute.xlu0 1
      %406 = vperm.xlu0 %405, %v382
      %v407 = vpop.permute.xlu0 %406
      %v409 = vlaneseq
      %v410 = vshrl.u32 %v409, 7
      %v411 = vsub.s32 1, %v410
      %v412 = vrot.slane %v383, %v411
      %v413 = vmul.f32 %v403, %v412
      %v414 = vmul.f32 %v407, %v412
      %v415 = vadd.f32 %v399, %v413
      %v416 = vadd.f32 %v400, %v414
      %v418 = vlaneseq
      %v419 = vshrl.u32 %v418, 7
      %v420 = vsub.s32 0, %v419
      %v421 = vrot.slane %v384, %v420
      %v423 = vadd.f32 %v415, %v421
      %v424 = vadd.f32 %v416, %v421
      %v425 = vtanh.pop %v423
      %v426 = vtanh.pop %v424
      %v427 = vmul.f32 %v425, %v425
      %v428 = vmul.f32 %v426, %v426
      %v429 = vsub.f32 1.0, %v427
      %v430 = vsub.f32 1.0, %v428
      %v431 = vmul.f32 %v429, %v398
      %v432 = vmul.f32 %v430, %v398
      %v433 = vmul.f32 %v425, -2.0
      %v434 = vmul.f32 %v426, -2.0
      %v435 = vmul.f32 %v433, %v429
      %v436 = vmul.f32 %v434, %v430
      %v437 = vmul.f32 %v435, %v398
      %v438 = vmul.f32 %v436, %v398
      %v439 = vmul.f32 %v437, %v398
      %v440 = vmul.f32 %v438, %v398
      %v441 = vld [vmem:[%s5] sm:$0xff]
      %v442 = vld [vmem:[%s5 + $0x8] sm:$0xff]
      %v443 = vld [vmem:[%s5 + $0x10] sm:$0xff]
      %v444 = vld [vmem:[%s5 + $0x18] sm:$0xff]
      %v445 = vld [vmem:[%s6] sm:$0x1]
      %v447 = vlaneseq
      %v448 = vshrl.u32 %v447, 7
      %v449 = vsub.s32 0, %v448
      %v450 = vrot.slane %v445, %v449
      %vm452 = vcmask 261120
      %v454 = vsel %vm452, %v425, 0
      %v457 = vsel %vm452, %v426, 0
      %459 = vmatprep.subr.mxu0 0.0
      %460 = vmatpush1.msra.mxu0 0.0
      %461 = vmatprep.subr.mxu0 0.0
      %462 = vmatpush1.msra.mxu0 0.0
      %463 = vmatprep.subr.mxu0 0.0
      %464 = vmatpush1.msra.mxu0 0.0
      %465 = vmatprep.subr.mxu0 0.0
      %466 = vmatpush1.msra.mxu0 0.0
      %467 = vmatprep.subr.mxu0 0.0
      %468 = vmatpush1.msra.mxu0 0.0
      %469 = vmatprep.subr.mxu0 0.0
      %470 = vmatpush1.msra.mxu0 0.0
      %471 = vmatprep.subr.mxu0 0.0
      %472 = vmatpush1.msra.mxu0 0.0
      %473 = vmatprep.subr.mxu0 0.0
      %474 = vmatpush1.msra.mxu0 0.0
      %475 = vmatprep.subr.mxu0 0.0
      %476 = vmatpush1.msra.mxu0 0.0
      %477 = vmatprep.subr.mxu0 0.0
      %478 = vmatpush1.msra.mxu0 0.0
      %479 = vmatprep.subr.mxu0 0.0
      %480 = vmatpush1.msra.mxu0 0.0
      %481 = vmatprep.subr.mxu0 0.0
      %482 = vmatpush1.msra.mxu0 0.0
      %483 = vmatprep.subr.mxu0 0.0
      %484 = vmatpush1.msra.mxu0 %v444
      %485 = vmatprep.subr.mxu0 0.0
      %486 = vmatpush1.msra.mxu0 %v443
      %487 = vmatprep.subr.mxu0 0.0
      %488 = vmatpush1.msra.mxu0 %v442
      %489 = vmatprep.subr.mxu0 0.0
      %490 = vmatpush1.msra.mxu0 %v441
      %491 = vmatprep.subr.mxu0 0.0
      %492 = vmatpush2.msra.mxu0 0.0
      %493 = vmatprep.subr.mxu0 0.0
      %494 = vmatpush2.msra.mxu0 0.0
      %495 = vmatprep.subr.mxu0 0.0
      %496 = vmatpush2.msra.mxu0 0.0
      %497 = vmatprep.subr.mxu0 0.0
      %498 = vmatpush2.msra.mxu0 0.0
      %499 = vmatprep.subr.mxu0 0.0
      %500 = vmatpush2.msra.mxu0 0.0
      %501 = vmatprep.subr.mxu0 0.0
      %502 = vmatpush2.msra.mxu0 0.0
      %503 = vmatprep.subr.mxu0 0.0
      %504 = vmatpush2.msra.mxu0 0.0
      %505 = vmatprep.subr.mxu0 0.0
      %506 = vmatpush2.msra.mxu0 0.0
      %507 = vmatprep.subr.mxu0 0.0
      %508 = vmatpush2.msra.mxu0 0.0
      %509 = vmatprep.subr.mxu0 0.0
      %510 = vmatpush2.msra.mxu0 0.0
      %511 = vmatprep.subr.mxu0 0.0
      %512 = vmatpush2.msra.mxu0 0.0
      %513 = vmatprep.subr.mxu0 0.0
      %514 = vmatpush2.msra.mxu0 0.0
      %515 = vmatprep.subr.mxu0 0.0
      %516 = vmatpush2.msra.mxu0 0.0
      %517 = vmatprep.subr.mxu0 0.0
      %518 = vmatpush2.msra.mxu0 0.0
      %519 = vmatprep.subr.mxu0 0.0
      %520 = vmatpush2.msra.mxu0 0.0
      %521 = vmatprep.subr.mxu0 0.0
      %522 = vmatpush2.msra.mxu0 0.0
      %523 = vmatprep.mubr.f32.mxu0 0.0
      %524 = vmatmul.mubr.f32.gmra.mxu0 %v454
      %v525 = vpop.f32.mrf.mxu0
      %v526 = vadd.f32 %v450, %v525
      %v527 = vpop.f32.mrf.mxu0
      %528 = vmatprep.mubr.f32.mxu0 0.0
      %529 = vmatmul.mubr.f32.gmra.mxu0 %v457
      %v530 = vpop.f32.mrf.mxu0
      %v531 = vadd.f32 %v450, %v530
      %v532 = vpop.f32.mrf.mxu0
      %533 = vdwg.mxu0
      %v535 = vsel %vm452, %v431, 0
      %v538 = vsel %vm452, %v432, 0
      %540 = vmatprep.subr.mxu0 0.0
      %541 = vmatpush1.msra.mxu0 0.0
      %542 = vmatprep.subr.mxu0 0.0
      %543 = vmatpush1.msra.mxu0 0.0
      %544 = vmatprep.subr.mxu0 0.0
      %545 = vmatpush1.msra.mxu0 0.0
      %546 = vmatprep.subr.mxu0 0.0
      %547 = vmatpush1.msra.mxu0 0.0
      %548 = vmatprep.subr.mxu0 0.0
      %549 = vmatpush1.msra.mxu0 0.0
      %550 = vmatprep.subr.mxu0 0.0
      %551 = vmatpush1.msra.mxu0 0.0
      %552 = vmatprep.subr.mxu0 0.0
      %553 = vmatpush1.msra.mxu0 0.0
      %554 = vmatprep.subr.mxu0 0.0
      %555 = vmatpush1.msra.mxu0 0.0
      %556 = vmatprep.subr.mxu0 0.0
      %557 = vmatpush1.msra.mxu0 0.0
      %558 = vmatprep.subr.mxu0 0.0
      %559 = vmatpush1.msra.mxu0 0.0
      %560 = vmatprep.subr.mxu0 0.0
      %561 = vmatpush1.msra.mxu0 0.0
      %562 = vmatprep.subr.mxu0 0.0
      %563 = vmatpush1.msra.mxu0 0.0
      %564 = vmatprep.subr.mxu0 0.0
      %565 = vmatpush1.msra.mxu0 %v444
      %566 = vmatprep.subr.mxu0 0.0
      %567 = vmatpush1.msra.mxu0 %v443
      %568 = vmatprep.subr.mxu0 0.0
      %569 = vmatpush1.msra.mxu0 %v442
      %570 = vmatprep.subr.mxu0 0.0
      %571 = vmatpush1.msra.mxu0 %v441
      %572 = vmatprep.subr.mxu0 0.0
      %573 = vmatpush2.msra.mxu0 0.0
      %574 = vmatprep.subr.mxu0 0.0
      %575 = vmatpush2.msra.mxu0 0.0
      %576 = vmatprep.subr.mxu0 0.0
      %577 = vmatpush2.msra.mxu0 0.0
      %578 = vmatprep.subr.mxu0 0.0
      %579 = vmatpush2.msra.mxu0 0.0
      %580 = vmatprep.subr.mxu0 0.0
      %581 = vmatpush2.msra.mxu0 0.0
      %582 = vmatprep.subr.mxu0 0.0
      %583 = vmatpush2.msra.mxu0 0.0
      %584 = vmatprep.subr.mxu0 0.0
      %585 = vmatpush2.msra.mxu0 0.0
      %586 = vmatprep.subr.mxu0 0.0
      %587 = vmatpush2.msra.mxu0 0.0
      %588 = vmatprep.subr.mxu0 0.0
      %589 = vmatpush2.msra.mxu0 0.0
      %590 = vmatprep.subr.mxu0 0.0
      %591 = vmatpush2.msra.mxu0 0.0
      %592 = vmatprep.subr.mxu0 0.0
      %593 = vmatpush2.msra.mxu0 0.0
      %594 = vmatprep.subr.mxu0 0.0
      %595 = vmatpush2.msra.mxu0 0.0
      %596 = vmatprep.subr.mxu0 0.0
      %597 = vmatpush2.msra.mxu0 0.0
      %598 = vmatprep.subr.mxu0 0.0
      %599 = vmatpush2.msra.mxu0 0.0
      %600 = vmatprep.subr.mxu0 0.0
      %601 = vmatpush2.msra.mxu0 0.0
      %602 = vmatprep.subr.mxu0 0.0
      %603 = vmatpush2.msra.mxu0 0.0
      %604 = vmatprep.mubr.f32.mxu0 0.0
      %605 = vmatmul.mubr.f32.gmra.mxu0 %v535
      %v606 = vpop.f32.mrf.mxu0
      %v607 = vadd.f32 0.0, %v606
      %v608 = vpop.f32.mrf.mxu0
      %609 = vmatprep.mubr.f32.mxu0 0.0
      %610 = vmatmul.mubr.f32.gmra.mxu0 %v538
      %v611 = vpop.f32.mrf.mxu0
      %v612 = vadd.f32 0.0, %v611
      %v613 = vpop.f32.mrf.mxu0
      %614 = vdwg.mxu0
      %v616 = vsel %vm452, %v439, 0
      %v619 = vsel %vm452, %v440, 0
      %621 = vmatprep.subr.mxu0 0.0
      %622 = vmatpush1.msra.mxu0 0.0
      %623 = vmatprep.subr.mxu0 0.0
      %624 = vmatpush1.msra.mxu0 0.0
      %625 = vmatprep.subr.mxu0 0.0
      %626 = vmatpush1.msra.mxu0 0.0
      %627 = vmatprep.subr.mxu0 0.0
      %628 = vmatpush1.msra.mxu0 0.0
      %629 = vmatprep.subr.mxu0 0.0
      %630 = vmatpush1.msra.mxu0 0.0
      %631 = vmatprep.subr.mxu0 0.0
      %632 = vmatpush1.msra.mxu0 0.0
      %633 = vmatprep.subr.mxu0 0.0
      %634 = vmatpush1.msra.mxu0 0.0
      %635 = vmatprep.subr.mxu0 0.0
      %636 = vmatpush1.msra.mxu0 0.0
      %637 = vmatprep.subr.mxu0 0.0
      %638 = vmatpush1.msra.mxu0 0.0
      %639 = vmatprep.subr.mxu0 0.0
      %640 = vmatpush1.msra.mxu0 0.0
      %641 = vmatprep.subr.mxu0 0.0
      %642 = vmatpush1.msra.mxu0 0.0
      %643 = vmatprep.subr.mxu0 0.0
      %644 = vmatpush1.msra.mxu0 0.0
      %645 = vmatprep.subr.mxu0 0.0
      %646 = vmatpush1.msra.mxu0 %v444
      %647 = vmatprep.subr.mxu0 0.0
      %648 = vmatpush1.msra.mxu0 %v443
      %649 = vmatprep.subr.mxu0 0.0
      %650 = vmatpush1.msra.mxu0 %v442
      %651 = vmatprep.subr.mxu0 0.0
      %652 = vmatpush1.msra.mxu0 %v441
      %653 = vmatprep.subr.mxu0 0.0
      %654 = vmatpush2.msra.mxu0 0.0
      %655 = vmatprep.subr.mxu0 0.0
      %656 = vmatpush2.msra.mxu0 0.0
      %657 = vmatprep.subr.mxu0 0.0
      %658 = vmatpush2.msra.mxu0 0.0
      %659 = vmatprep.subr.mxu0 0.0
      %660 = vmatpush2.msra.mxu0 0.0
      %661 = vmatprep.subr.mxu0 0.0
      %662 = vmatpush2.msra.mxu0 0.0
      %663 = vmatprep.subr.mxu0 0.0
      %664 = vmatpush2.msra.mxu0 0.0
      %665 = vmatprep.subr.mxu0 0.0
      %666 = vmatpush2.msra.mxu0 0.0
      %667 = vmatprep.subr.mxu0 0.0
      %668 = vmatpush2.msra.mxu0 0.0
      %669 = vmatprep.subr.mxu0 0.0
      %670 = vmatpush2.msra.mxu0 0.0
      %671 = vmatprep.subr.mxu0 0.0
      %672 = vmatpush2.msra.mxu0 0.0
      %673 = vmatprep.subr.mxu0 0.0
      %674 = vmatpush2.msra.mxu0 0.0
      %675 = vmatprep.subr.mxu0 0.0
      %676 = vmatpush2.msra.mxu0 0.0
      %677 = vmatprep.subr.mxu0 0.0
      %678 = vmatpush2.msra.mxu0 0.0
      %679 = vmatprep.subr.mxu0 0.0
      %680 = vmatpush2.msra.mxu0 0.0
      %681 = vmatprep.subr.mxu0 0.0
      %682 = vmatpush2.msra.mxu0 0.0
      %683 = vmatprep.subr.mxu0 0.0
      %684 = vmatpush2.msra.mxu0 0.0
      %685 = vmatprep.mubr.f32.mxu0 0.0
      %686 = vmatmul.mubr.f32.gmra.mxu0 %v616
      %v687 = vpop.f32.mrf.mxu0
      %v688 = vadd.f32 0.0, %v687
      %v689 = vpop.f32.mrf.mxu0
      %690 = vmatprep.mubr.f32.mxu0 0.0
      %691 = vmatmul.mubr.f32.gmra.mxu0 %v619
      %v692 = vpop.f32.mrf.mxu0
      %v693 = vadd.f32 0.0, %v692
      %v694 = vpop.f32.mrf.mxu0
      %695 = vdwg.mxu0
      %v696 = vtanh.pop %v526
      %v697 = vtanh.pop %v531
      %v698 = vmul.f32 %v696, %v696
      %v699 = vmul.f32 %v697, %v697
      %v700 = vsub.f32 1.0, %v698
      %v701 = vsub.f32 1.0, %v699
      %v702 = vmul.f32 %v700, %v607
      %v703 = vmul.f32 %v701, %v612
      %v704 = vmul.f32 %v696, -2.0
      %v705 = vmul.f32 %v697, -2.0
      %v706 = vmul.f32 %v704, %v700
      %v707 = vmul.f32 %v705, %v701
      %v708 = vmul.f32 %v706, %v607
      %v709 = vmul.f32 %v707, %v612
      %v710 = vmul.f32 %v708, %v607
      %v711 = vmul.f32 %v709, %v612
      %v712 = vmul.f32 %v700, %v688
      %v713 = vmul.f32 %v701, %v693
      %v714 = vadd.f32 %v710, %v712
      %v715 = vadd.f32 %v711, %v713
      %v716 = vld [vmem:[%s352] sm:$0xff]
      %v717 = vld [vmem:[%s352 + $0x8] sm:$0xff]
      %v718 = vlaneseq
      %v719 = vand.u32 %v718, 127
      %720 = vset.pattern.permute.xlu0 0
      %721 = vperm.xlu0 %720, %v716
      %v722 = vpop.permute.xlu0 %721
      %723 = vset.pattern.permute.xlu0 0
      %724 = vperm.xlu0 %723, %v717
      %v725 = vpop.permute.xlu0 %724
      %vm726 = vcmp.eq.s32.totalorder %v719, %v722
      %vm727 = vcmp.eq.s32.totalorder %v719, %v725
      %v728 = vsel %vm726, 1, 0
      %v729 = vsel %vm727, 1, 0
      %v730 = vcvt.s32.f32 %v728
      %v731 = vcvt.s32.f32 %v729
      %v732 = vld [vmem:[%s7] sm:$0xff]
      %v733 = vld [vmem:[%s7 + $0x8] sm:$0x3]
      %vm734 = vcmask 80896
      %v736 = vsel %vm734, %v730, 0
      %v739 = vsel %vm734, %v731, 0
      %vm741 = vcmask 1041408
      %v743 = vsel %vm741, %v733, 0
      %745 = vmatprep.subr.mxu0 0.0
      %746 = vmatpush1.msra.mxu0 0.0
      %747 = vmatprep.subr.mxu0 0.0
      %748 = vmatpush1.msra.mxu0 0.0
      %749 = vmatprep.subr.mxu0 0.0
      %750 = vmatpush1.msra.mxu0 0.0
      %751 = vmatprep.subr.mxu0 0.0
      %752 = vmatpush1.msra.mxu0 0.0
      %753 = vmatprep.subr.mxu0 0.0
      %754 = vmatpush1.msra.mxu0 0.0
      %755 = vmatprep.subr.mxu0 0.0
      %756 = vmatpush1.msra.mxu0 0.0
      %757 = vmatprep.subr.mxu0 0.0
      %758 = vmatpush1.msra.mxu0 0.0
      %759 = vmatprep.subr.mxu0 0.0
      %760 = vmatpush1.msra.mxu0 0.0
      %761 = vmatprep.subr.mxu0 0.0
      %762 = vmatpush1.msra.mxu0 0.0
      %763 = vmatprep.subr.mxu0 0.0
      %764 = vmatpush1.msra.mxu0 0.0
      %765 = vmatprep.subr.mxu0 0.0
      %766 = vmatpush1.msra.mxu0 0.0
      %767 = vmatprep.subr.mxu0 0.0
      %768 = vmatpush1.msra.mxu0 0.0
      %769 = vmatprep.subr.mxu0 0.0
      %770 = vmatpush1.msra.mxu0 0.0
      %771 = vmatprep.subr.mxu0 0.0
      %772 = vmatpush1.msra.mxu0 0.0
      %773 = vmatprep.subr.mxu0 0.0
      %774 = vmatpush1.msra.mxu0 %v743
      %775 = vmatprep.subr.mxu0 0.0
      %776 = vmatpush1.msra.mxu0 %v732
      %777 = vmatprep.subr.mxu0 0.0
      %778 = vmatpush2.msra.mxu0 0.0
      %779 = vmatprep.subr.mxu0 0.0
      %780 = vmatpush2.msra.mxu0 0.0
      %781 = vmatprep.subr.mxu0 0.0
      %782 = vmatpush2.msra.mxu0 0.0
      %783 = vmatprep.subr.mxu0 0.0
      %784 = vmatpush2.msra.mxu0 0.0
      %785 = vmatprep.subr.mxu0 0.0
      %786 = vmatpush2.msra.mxu0 0.0
      %787 = vmatprep.subr.mxu0 0.0
      %788 = vmatpush2.msra.mxu0 0.0
      %789 = vmatprep.subr.mxu0 0.0
      %790 = vmatpush2.msra.mxu0 0.0
      %791 = vmatprep.subr.mxu0 0.0
      %792 = vmatpush2.msra.mxu0 0.0
      %793 = vmatprep.subr.mxu0 0.0
      %794 = vmatpush2.msra.mxu0 0.0
      %795 = vmatprep.subr.mxu0 0.0
      %796 = vmatpush2.msra.mxu0 0.0
      %797 = vmatprep.subr.mxu0 0.0
      %798 = vmatpush2.msra.mxu0 0.0
      %799 = vmatprep.subr.mxu0 0.0
      %800 = vmatpush2.msra.mxu0 0.0
      %801 = vmatprep.subr.mxu0 0.0
      %802 = vmatpush2.msra.mxu0 0.0
      %803 = vmatprep.subr.mxu0 0.0
      %804 = vmatpush2.msra.mxu0 0.0
      %805 = vmatprep.subr.mxu0 0.0
      %806 = vmatpush2.msra.mxu0 0.0
      %807 = vmatprep.subr.mxu0 0.0
      %808 = vmatpush2.msra.mxu0 0.0
      %809 = vmatprep.mubr.f32.mxu0 0.0
      %810 = vmatmul.mubr.f32.gmra.mxu0 %v736
      %v811 = vpop.f32.mrf.mxu0
      %v812 = vadd.f32 0.0, %v811
      %v813 = vpop.f32.mrf.mxu0
      %814 = vmatprep.mubr.f32.mxu0 0.0
      %815 = vmatmul.mubr.f32.gmra.mxu0 %v739
      %v816 = vpop.f32.mrf.mxu0
      %v817 = vadd.f32 0.0, %v816
      %v818 = vpop.f32.mrf.mxu0
      %819 = vdwg.mxu0
      %v820 = vld [vmem:[%s8] sm:$0x1]
      %v822 = vlaneseq
      %v823 = vshrl.u32 %v822, 7
      %v824 = vsub.s32 0, %v823
      %v825 = vrot.slane %v820, %v824
      %v827 = vmul.f32 %v730, %v825
      %v828 = vmul.f32 %v731, %v825
      %v829 = vsel %vm734, %v827, 0.0
      %830 = vadd.xlane.f32.xlu0 %v829
      %v831 = vpop.xlane.xlu0 %830
      %v832 = vsel %vm734, %v828, 0.0
      %833 = vadd.xlane.f32.xlu0 %v832
      %v834 = vpop.xlane.xlu0 %833
      %v835 = vmul.f32 %v696, %v812
      %v836 = vmul.f32 %v697, %v817
      %v837 = vsel %vm452, %v835, 0.0
      %838 = vadd.xlane.f32.xlu0 %v837
      %v839 = vpop.xlane.xlu0 %838
      %v840 = vsel %vm452, %v836, 0.0
      %841 = vadd.xlane.f32.xlu0 %v840
      %v842 = vpop.xlane.xlu0 %841
      %v843 = vadd.f32 %v839, %v831
      %v844 = vadd.f32 %v842, %v834
      %v845 = vmul.f32 %v702, %v812
      %v846 = vmul.f32 %v703, %v817
      %v847 = vsel %vm452, %v845, 0.0
      %848 = vadd.xlane.f32.xlu0 %v847
      %v849 = vpop.xlane.xlu0 %848
      %v850 = vsel %vm452, %v846, 0.0
      %851 = vadd.xlane.f32.xlu0 %v850
      %v852 = vpop.xlane.xlu0 %851
      %v853 = vmul.f32 %v714, %v812
      %v854 = vmul.f32 %v715, %v817
      %v855 = vsel %vm452, %v853, 0.0
      %856 = vadd.xlane.f32.xlu0 %v855
      %v857 = vpop.xlane.xlu0 %856
      %v858 = vsel %vm452, %v854, 0.0
      %859 = vadd.xlane.f32.xlu0 %v858
      %v860 = vpop.xlane.xlu0 %859
      %p861 = scmp.eq.s32.totalorder %s20, 0
      // Predicated region
      $region61: #{_bsde_device_core.2} parent=55 // pred_check
        %p862 = pneg %p861
      $region62: #{_bsde_device_core.2} parent=55 // pred_check_branch
        %864 = sbr.rel (%p862) target = $region64
      $region63: #{_bsde_device_core.2} parent=55 // pred_region
        %vm865 = vcmask 7168
        %866 = vst.msk [vmem:[%s9] sm:$0xff] %vm865, %v843
        %867 = vst.msk [vmem:[%s9 + $0x8] sm:$0xff] %vm865, %v844
      $region64: #{_bsde_device_core.2} parent=55 // pred_fallthru
        _
      %vm868 = vcmask 7168
      %869 = vst.msk [vmem:[#allocation2] sm:$0xff] %vm868, %v849
      %870 = vst.msk [vmem:[#allocation2 + $0x8] sm:$0xff] %vm868, %v852
      %871 = vst.msk [vmem:[#allocation3] sm:$0xff] %vm868, %v857
      %872 = vst.msk [vmem:[#allocation3 + $0x8] sm:$0xff] %vm868, %v860
      // Predicated region
      $region65: #{_bsde_device_core.2} parent=55 // pred_check
        %p873 = pneg %p237
      $region66: #{_bsde_device_core.2} parent=55 // pred_check_branch
        %875 = sbr.rel (%p873) target = $region68
      $region67: #{_bsde_device_core.2} parent=55 // pred_region
        _
      $region68: #{_bsde_device_core.2} parent=55 // pred_fallthru
        _
      // Predicated region
      $region69: #{_bsde_device_core.2} parent=55 // pred_check
        %p876 = pneg %p237
      $region70: #{_bsde_device_core.2} parent=55 // pred_check_branch
        %878 = sbr.rel (%p876) target = $region72
      $region71: #{_bsde_device_core.2} parent=55 // pred_region
        _
      $region72: #{_bsde_device_core.2} parent=55 // pred_fallthru
        _
    $region56: #{_bsde_device_core.2} parent=5 // pred_fallthru
      _
    %p879 = scmp.le.s32.totalorder 2, %s15
    // Predicated region
    $region73: #{_bsde_device_core.2} parent=5 // pred_check
      %p880 = pneg %p879
    $region74: #{_bsde_device_core.2} parent=5 // pred_check_branch
      %882 = sbr.rel (%p880) target = $region76
    $region75: #{_bsde_device_core.2} parent=5 // pred_region
      %s883 = ssub.s32 %s15, 2
    $region76: #{_bsde_device_core.2} parent=5 // pred_fallthru
      _
  $region6: #{_bsde_device_core.2} parent=0 // loop_footer
    %s19 = sadd.s32 1, %s15
  $region7: #{_bsde_device_core.2} parent=0 // loop_footer_branch
    %14 = sbr.rel target = $region3
  $region8: #{_bsde_device_core.2} parent=0 // loop_exit
    _

</llo_original>
